<compile_context>
chip_gen: v6e
topology: v6e:2x2x1
jax: 0.10.0
libtpu: 0.0.40
codegen_flags: <defaults>
</compile_context>

<pallas_src>
import numpy as np
import jax
import jax.numpy as jnp
from jax.experimental import pallas as pl
from jax.experimental.pallas import tpu as pltpu

# ------------------- configuration (small, deterministic) -------------------
FEATURE_DIMS = [10, 20, 30, 40]   # vocab sizes of the discrete features
DENSE_DIM    = 3                  # dense_feature_dims
EMBED_DIM    = 8                  # embed_dim
HIDDEN       = 32                 # hidden_size
NUM_DNN      = 2                  # num_dnn_layers
NUM_CIN      = 2                  # num_cin_layers
FMAPS        = 4                  # feature_maps
BATCH        = 500                # example batch
MAX_BLOCK_B  = 2048               # cap on batch columns per grid step (VMEM-safe on v7x)
BN_EPS       = 1e-5
MXU_DTYPE    = jnp.bfloat16       # MXU operand dtype (f32 accumulation)

N_FIELDS = len(FEATURE_DIMS)
N_FEAT   = N_FIELDS + DENSE_DIM            # CIN channels (= num_features = 7)

# ----- batch-slab row layout (batch is on the lane axis; these are sublane rows) -----
ROW_X0    = 0                              # rows [0, N_FEAT*E): x0 channels, row = n*E + d
ROW_DENSE = N_FEAT * EMBED_DIM             # 56: raw dense features
ROW_LIN   = ROW_DENSE + DENSE_DIM          # 59: per-field linear-embedding values
ROW_ONES  = ROW_LIN + N_FIELDS             # 63: constant ones (bias carrier)
SLAB_ROWS = ((ROW_ONES + 1 + 7) // 8) * 8  # 64
ONES_H    = 63                             # ones-passthrough row inside DNN activations

CIN_ROWS   = FMAPS * EMBED_DIM * (N_FEAT + (NUM_CIN - 1) * FMAPS)   # 352
FUSED_ROWS = SLAB_ROWS + CIN_ROWS + 8      # DNN layer0 | CIN T weights | linear head row
OFF_HCOL   = FUSED_ROWS + SLAB_ROWS * (NUM_DNN - 1)   # head-column block start
WP_ROWS    = OFF_HCOL + SLAB_ROWS                     # + 64-row head-column block

assert SLAB_ROWS == 64
assert FMAPS * EMBED_DIM * NUM_CIN <= SLAB_ROWS       # CIN head column fits in 64 rows
assert HIDDEN < ONES_H and N_FIELDS * EMBED_DIM <= ROW_DENSE


# ------------------------------ parameter init -------------------------------
def xavier_uniform(key, shape, fan_in, fan_out):
    a = float(np.sqrt(6.0 / (fan_in + fan_out)))
    return jax.random.uniform(key, shape, jnp.float32, -a, a)


def init_params(key):
    num_features = N_FEAT
    keys = iter(jax.random.split(key, 64))
    p = {}
    # linear part
    p['w_dense'] = xavier_uniform(next(keys), (1, DENSE_DIM), DENSE_DIM, 1)
    p['b_dense'] = jnp.zeros((1,), jnp.float32)
    p['lin_tables'] = [xavier_uniform(next(keys), (d, 1), d, 1) for d in FEATURE_DIMS]
    p['emb_tables'] = [xavier_uniform(next(keys), (d, EMBED_DIM), d, EMBED_DIM)
                       for d in FEATURE_DIMS]
    # DNN (Linear + BatchNorm running stats/affine)
    in_dim = N_FIELDS * EMBED_DIM + DENSE_DIM
    dnn = []
    for j in range(NUM_DNN):
        out_dim = HIDDEN // (2 ** j)
        W = xavier_uniform(next(keys), (out_dim, in_dim), in_dim, out_dim)
        b = jnp.zeros((out_dim,), jnp.float32)
        gamma = jnp.ones((out_dim,), jnp.float32)
        beta = jnp.zeros((out_dim,), jnp.float32)
        rmean = jnp.zeros((out_dim,), jnp.float32)   # BatchNorm1d running stats at init
        rvar = jnp.ones((out_dim,), jnp.float32)
        dnn.append((W, b, gamma, beta, rmean, rvar))
        in_dim = out_dim
    p['dnn'] = dnn
    p['w_dnn_out'] = xavier_uniform(next(keys), (1, in_dim), in_dim, 1)
    p['b_dnn_out'] = jnp.zeros((1,), jnp.float32)
    # CIN
    p['dense_proj'] = xavier_uniform(next(keys), (DENSE_DIM, EMBED_DIM),
                                     DENSE_DIM, EMBED_DIM)
    cin = []
    for j in range(NUM_CIN):
        C = num_features if j == 0 else FMAPS
        W = xavier_uniform(next(keys), (FMAPS, C, num_features),
                           C * num_features, FMAPS * num_features)
        cin.append(W)
    p['cin'] = cin
    p['w_cin_out'] = xavier_uniform(next(keys), (1, FMAPS * NUM_CIN),
                                    FMAPS * NUM_CIN, 1)
    p['b_cin_out'] = jnp.zeros((1,), jnp.float32)
    return p


# ------------------------- weight folding & packing --------------------------
def build_weight_slab(params):
    """Pack every parameter into one [WP_ROWS, 64] bf16 slab (single DMA, matmul-LHS only).

    Row blocks:
      [0, 64)            DNN layer-0 weights mapped onto slab columns (BN folded,
                         bias in the ones column, ones-passthrough row).
      [64, 64+352)       CIN weights, kron'ed with I_E so one matmul produces
                         T[f,c,d,b] = sum_n W[f,c,n] * x0[b,n,d] for both layers.
      [416, 424)         linear-head row (w_dense, field sum, all scalar biases).
      [424, 488)         DNN layer-1 block (bias via ones row).
      [488, 552)         head COLUMN block: column 0 = DNN output head (by activation
                         row), column 1 = CIN output head repeated over embed dim
                         (row l*F*E + f*E + e).  Consumed by the VPU, not the MXU.
    """
    f32 = jnp.float32
    nf, E, F, L = N_FIELDS, EMBED_DIM, FMAPS, NUM_CIN

    # BN folding (inference mode: running statistics).
    folded = []
    for (W, b, gamma, beta, rmean, rvar) in params['dnn']:
        s = gamma / jnp.sqrt(rvar + BN_EPS)
        folded.append((W * s[:, None], (b - rmean) * s + beta))

    # DNN layer 0: consumes the batch slab directly.
    W0, b0 = folded[0]
    out0 = W0.shape[0]
    blk0 = jnp.zeros((SLAB_ROWS, SLAB_ROWS), f32)
    blk0 = blk0.at[0:out0, 0:nf * E].set(W0[:, 0:nf * E])                       # embeddings
    blk0 = blk0.at[0:out0, ROW_DENSE:ROW_DENSE + DENSE_DIM].set(W0[:, nf * E:]) # dense feats
    blk0 = blk0.at[0:out0, ROW_ONES].set(b0)                                    # bias
    blk0 = blk0.at[ONES_H, ROW_ONES].set(1.0)                                   # ones carry

    # CIN weights: kron with I_E (columns indexed by slab rows n*E + d).
    cin_blocks = []
    for Wj in params['cin']:                                   # [F, Cj, N]
        Fm, Cj, Nn = Wj.shape
        cin_blocks.append(jnp.kron(Wj.reshape(Fm * Cj, Nn), jnp.eye(E, dtype=f32)))
    wcin = jnp.concatenate(cin_blocks, axis=0)                 # [352, 56]
    wcin = jnp.pad(wcin, ((0, 0), (0, SLAB_ROWS - wcin.shape[1])))

    # Linear head row over the batch slab; all scalar output biases folded here.
    b_total = params['b_dense'][0] + params['b_dnn_out'][0] + params['b_cin_out'][0]
    lin_blk = jnp.zeros((8, SLAB_ROWS), f32)
    lin_blk = lin_blk.at[0, ROW_DENSE:ROW_DENSE + DENSE_DIM].set(params['w_dense'][0])
    lin_blk = lin_blk.at[0, ROW_LIN:ROW_LIN + nf].set(1.0)     # sum of field embeddings
    lin_blk = lin_blk.at[0, ROW_ONES].set(b_total)

    # Later DNN layers.
    later = []
    for (Wk, bk) in folded[1:]:
        ok, ik = Wk.shape
        blk = jnp.zeros((SLAB_ROWS, SLAB_ROWS), f32)
        blk = blk.at[0:ok, 0:ik].set(Wk)
        blk = blk.at[0:ok, ONES_H].set(bk)
        blk = blk.at[ONES_H, ONES_H].set(1.0)
        later.append(blk)

    # Head COLUMNS for the VPU (no biases here — already folded into b_total).
    hcol = jnp.zeros((SLAB_ROWS, SLAB_ROWS), f32)
    hcol = hcol.at[0:params['w_dnn_out'].shape[1], 0].set(params['w_dnn_out'][0])
    hcol = hcol.at[0:F * E * L, 1].set(jnp.repeat(params['w_cin_out'][0], E))

    wp = jnp.concatenate([blk0, wcin, lin_blk] + later + [hcol], axis=0)
    assert wp.shape == (WP_ROWS, SLAB_ROWS)
    return wp.astype(MXU_DTYPE)              # stored bf16: no per-step operand casts


# --------------------------------- kernel ------------------------------------
def make_kernel(block_b, num_dnn, num_cin):
    BT = block_b
    N, E, F = N_FEAT, EMBED_DIM, FMAPS
    OFF_T = SLAB_ROWS                     # start of CIN T rows in the fused result
    OFF_LIN = SLAB_ROWS + CIN_ROWS        # linear-head row in the fused result
    FUSED = FUSED_ROWS
    HCOL = OFF_HCOL

    def kernel(slab_ref, wp_ref, out_ref):
        f32 = jnp.float32
        cdt = MXU_DTYPE
        slab = slab_ref[...]                                   # [64, BT] bf16 (no cast)

        # One fused MXU pass: DNN layer 0 + all CIN T contractions + linear head.
        lhs = wp_ref[0:FUSED, :]                               # [424, 64] bf16
        R = jnp.dot(lhs, slab, preferred_element_type=f32)     # [424, BT] f32

        # Head weight columns: one aligned [64, 64] load, sliced into [64, 1] columns.
        hcol = wp_ref[HCOL:HCOL + SLAB_ROWS, :]                # [64, 64] bf16
        w_do_col = hcol[:, 0:1].astype(f32)                    # DNN output head
        w_ci_col = hcol[:, 1:2].astype(f32)                    # CIN output head (repeated E)

        # ---- DNN (BN folded into weights; biases carried by the ones row) ----
        h = jnp.maximum(R[0:SLAB_ROWS], 0.0)                   # [64, BT] f32
        for k in range(1, num_dnn):
            wk = wp_ref[FUSED + SLAB_ROWS * (k - 1):FUSED + SLAB_ROWS * k, :]  # bf16
            h = jnp.maximum(jnp.dot(wk, h.astype(cdt), preferred_element_type=f32), 0.0)
        # DNN head on the VPU: broadcast-multiply + sublane reduce (no M=1 MXU pass).
        dnn_head = jnp.sum(w_do_col * h, axis=0, keepdims=True)       # [1, BT]

        # ---- linear head (already produced by the fused matmul) ----
        lin_head = R[OFF_LIN:OFF_LIN + 1]                      # [1, BT]

        # ---- CIN: unrolled channel accumulate; head folded into the loop ----
        T_all = R[OFF_T:OFF_LIN]                               # [352, BT] f32
        xj = slab[0:N * E, :].astype(f32).reshape(N, E, BT)    # x0, one upcast per step
        cin_head = jnp.zeros((1, BT), f32)
        off = 0
        for j in range(num_cin):
            Cj = N if j == 0 else F
            rows = F * Cj * E
            Tj = T_all[off:off + rows].reshape(F, Cj, E, BT)   # [F, Cj, E, BT]
            off += rows
            # acc += Tj[:, c] * xj[c]  — caps the live set at ~2x [F, E, BT]
            acc = Tj[:, 0] * xj[0]
            for c in range(1, Cj):
                acc = acc + Tj[:, c] * xj[c]                   # [F, E, BT]
            acc_flat = acc.reshape(F * E, BT)
            wj = w_ci_col[j * F * E:(j + 1) * F * E]           # [F*E, 1]
            cin_head = cin_head + jnp.sum(wj * acc_flat, axis=0, keepdims=True)
            xj = acc

        # Lane-dense output store: one [1, BT] row per grid step.
        out_ref[...] = lin_head + dnn_head + cin_head

    return kernel


# ------------------------------- wrapper --------------------------------------
def _choose_block_b(B, max_block=MAX_BLOCK_B, lane=128):
    """Pick the batch tile: as large as allowed, grid length kept even (megacore)."""
    n_tiles = max(2, 2 * ((B + 2 * max_block - 1) // (2 * max_block)))
    bb = ((-(-B // n_tiles)) + lane - 1) // lane * lane
    return max(lane, min(bb, max_block))


def xdeepfm_pallas(params, dense_x, discrete_x, block_b=None):
    B = dense_x.shape[0]
    nf, N, E = N_FIELDS, N_FEAT, EMBED_DIM
    f32 = jnp.float32
    if block_b is None:
        block_b = _choose_block_b(B)

    # ---- embedding gathers + layout plumbing (pure JAX glue) ----
    lin_emb = jnp.stack([params['lin_tables'][i][discrete_x[:, i], 0]
                         for i in range(nf)], axis=1)                      # [B, nf]
    x_embeds = jnp.stack([params['emb_tables'][i][discrete_x[:, i]]
                          for i in range(nf)], axis=1)                     # [B, nf, E]
    dense_emb = dense_x[:, :, None] * params['dense_proj'][None, :, :]     # [B, Dd, E]
    x0 = jnp.concatenate([x_embeds, dense_emb], axis=1)                    # [B, N, E]

    # Single batch slab [64, B]: x0 channels | dense feats | lin-emb values | ones.
    slab = jnp.concatenate(
        [x0.reshape(B, N * E), dense_x, lin_emb, jnp.ones((B, 1), f32)], axis=1).T

    # Pad batch to a multiple of the (128-aligned) block; padded columns are discarded.
    Bp = ((B + block_b - 1) // block_b) * block_b
    slab = jnp.pad(slab, ((0, SLAB_ROWS - slab.shape[0]), (0, Bp - B)))
    slab = slab.astype(MXU_DTYPE)          # bf16 streaming input: half the DMA bytes

    wp = build_weight_slab(params)                                         # [552, 64] bf16

    kernel = make_kernel(block_b, NUM_DNN, NUM_CIN)
    out_row = pl.pallas_call(
        kernel,
        out_shape=jax.ShapeDtypeStruct((1, Bp), f32),
        grid=(Bp // block_b,),
        in_specs=[
            pl.BlockSpec((SLAB_ROWS, block_b), lambda i: (0, i)),   # batch slab (gridded)
            pl.BlockSpec((WP_ROWS, SLAB_ROWS), lambda i: (0, 0)),   # packed weights
        ],
        out_specs=pl.BlockSpec((1, block_b), lambda i: (0, i)),
        compiler_params=pltpu.CompilerParams(
            dimension_semantics=("parallel",),
            vmem_limit_bytes=32 * 1024 * 1024),
    )(slab, wp)

    return out_row[0, :B].reshape(B, 1)


# --------------------------- pure-JAX reference --------------------------------
def xdeepfm_ref(params, dense_x, discrete_x):
    """Inference-mode (model.eval()) forward of the PyTorch module, in f32."""
    nf = N_FIELDS
    B = dense_x.shape[0]
    lin_emb = jnp.stack([params['lin_tables'][i][discrete_x[:, i]]
                         for i in range(nf)], axis=1)
    linear_logits = dense_x @ params['w_dense'].T + params['b_dense'] + lin_emb.sum(axis=1)
    x_embeds = jnp.stack([params['emb_tables'][i][discrete_x[:, i]]
                          for i in range(nf)], axis=1)
    h = jnp.concatenate([x_embeds.reshape(B, -1), dense_x], axis=1)
    for (W, b, gamma, beta, rmean, rvar) in params['dnn']:
        h = h @ W.T + b
        h = (h - rmean) / jnp.sqrt(rvar + BN_EPS) * gamma + beta   # eval-mode BatchNorm
        h = jnp.maximum(h, 0.0)                                    # ReLU; Dropout(eval)=id
    dnn_logits = h @ params['w_dnn_out'].T + params['b_dnn_out']
    dense_e = dense_x[:, :, None] * params['dense_proj'][None, :, :]
    x0 = jnp.concatenate([x_embeds, dense_e], axis=1)
    xj, p_list = x0, []
    for W in params['cin']:
        had = xj[:, :, None, :] * x0[:, None, :, :]                # [B, C, N, E]
        cin_out = jnp.einsum('bcnd,fcn->bfd', had, W)
        p_list.append(cin_out.sum(axis=-1))
        xj = cin_out
    cin_logits = jnp.concatenate(p_list, axis=1) @ params['w_cin_out'].T + params['b_cin_out']
    return linear_logits + dnn_logits + cin_logits


if __name__ == "__main__":
    key = jax.random.PRNGKey(0)
    pkey, dkey, xkey = jax.random.split(key, 3)
    params = init_params(pkey)
    dense_x = jax.random.normal(dkey, (BATCH, DENSE_DIM), jnp.float32)
    discrete_x = jnp.stack(
        [jax.random.randint(jax.random.fold_in(xkey, i), (BATCH,), 0, FEATURE_DIMS[i])
         for i in range(N_FIELDS)], axis=1)

    out = jax.block_until_ready(jax.jit(xdeepfm_pallas)(params, dense_x, discrete_x))
    ref = xdeepfm_ref(params, dense_x, discrete_x)
    assert out.shape == (BATCH, 1)
    # Tolerance reflects bf16 inputs/weights (f32 accumulation) vs the f32 reference.
    np.testing.assert_allclose(np.asarray(out), np.asarray(ref), rtol=5e-2, atol=5e-2)
    print("KERNEL_OK")
</pallas_src>

<mosaic_0001>
module attributes {stable_mosaic.version = 11 : i64} {
  func.func @kernel(%arg0: i32, %arg1: memref<64x256xbf16, #tpu.memory_space<vmem>>, %arg2: memref<552x64xbf16, #tpu.memory_space<vmem>>, %arg3: memref<1x256xf32, #tpu.memory_space<vmem>>) attributes {dimension_semantics = [#tpu.dimension_semantics<parallel>], iteration_bounds = array<i64: 2>, scalar_prefetch = 0 : i64, scratch_operands = 0 : i64, tpu.core_type = #tpu.core_type<tc>, window_params = [{transform_indices = @transform_0, window_bounds = array<i64: 64, 256>}, {pipeline_mode = #tpu.pipeline_mode<synchronous>, transform_indices = @transform_1, window_bounds = array<i64: 552, 64>}, {transform_indices = @transform_2, window_bounds = array<i64: 1, 256>}]} {
    %c0 = arith.constant 0 : index
    %c0_0 = arith.constant 0 : index
    %0 = vector.load %arg1[%c0, %c0_0] : memref<64x256xbf16, #tpu.memory_space<vmem>>, vector<64x256xbf16>
    %c0_1 = arith.constant 0 : index
    %c0_2 = arith.constant 0 : index
    %1 = vector.load %arg2[%c0_1, %c0_2] : memref<552x64xbf16, #tpu.memory_space<vmem>>, vector<424x64xbf16>
    %cst = arith.constant dense<0.000000e+00> : vector<424x256xf32>
    %2 = tpu.matmul %1, %0, %cst {dimension_numbers = #tpu.dot_dimension_numbers<[1], [0], [0], [1], [0, 0, 1, 1], [], []>} : vector<424x64xbf16>, vector<64x256xbf16>, vector<424x256xf32> -> vector<424x256xf32>
    %c488 = arith.constant 488 : index
    %c0_3 = arith.constant 0 : index
    %3 = vector.load %arg2[%c488, %c0_3] : memref<552x64xbf16, #tpu.memory_space<vmem>>, vector<64x64xbf16>
    %4 = vector.extract_strided_slice %3 {offsets = [0, 0], sizes = [64, 1], strides = [1, 1]} : vector<64x64xbf16> to vector<64x1xbf16>
    %5 = arith.extf %4 : vector<64x1xbf16> to vector<64x1xf32>
    %6 = vector.extract_strided_slice %3 {offsets = [0, 1], sizes = [64, 1], strides = [1, 1]} : vector<64x64xbf16> to vector<64x1xbf16>
    %7 = arith.extf %6 : vector<64x1xbf16> to vector<64x1xf32>
    %8 = vector.extract_strided_slice %2 {offsets = [0, 0], sizes = [64, 256], strides = [1, 1]} : vector<424x256xf32> to vector<64x256xf32>
    %cst_4 = arith.constant 0.000000e+00 : f32
    %9 = vector.broadcast %cst_4 : f32 to vector<64x256xf32>
    %10 = arith.maximumf %8, %9 : vector<64x256xf32>
    %c424 = arith.constant 424 : index
    %c0_5 = arith.constant 0 : index
    %11 = vector.load %arg2[%c424, %c0_5] : memref<552x64xbf16, #tpu.memory_space<vmem>>, vector<64x64xbf16>
    %12 = arith.truncf %10 : vector<64x256xf32> to vector<64x256xbf16>
    %cst_6 = arith.constant dense<0.000000e+00> : vector<64x256xf32>
    %13 = tpu.matmul %11, %12, %cst_6 {dimension_numbers = #tpu.dot_dimension_numbers<[1], [0], [0], [1], [0, 0, 1, 1], [], []>} : vector<64x64xbf16>, vector<64x256xbf16>, vector<64x256xf32> -> vector<64x256xf32>
    %cst_7 = arith.constant 0.000000e+00 : f32
    %14 = vector.broadcast %cst_7 : f32 to vector<64x256xf32>
    %15 = arith.maximumf %13, %14 : vector<64x256xf32>
    %16 = vector.broadcast %5 : vector<64x1xf32> to vector<64x256xf32>
    %17 = arith.mulf %16, %15 : vector<64x256xf32>
    %cst_8 = arith.constant dense<0.000000e+00> : vector<256xf32>
    %18 = vector.multi_reduction <add>, %17, %cst_8 [0] : vector<64x256xf32> to vector<256xf32>
    %19 = vector.shape_cast %18 : vector<256xf32> to vector<1x256xf32>
    %20 = vector.extract_strided_slice %2 {offsets = [416, 0], sizes = [1, 256], strides = [1, 1]} : vector<424x256xf32> to vector<1x256xf32>
    %21 = vector.extract_strided_slice %2 {offsets = [64, 0], sizes = [352, 256], strides = [1, 1]} : vector<424x256xf32> to vector<352x256xf32>
    %22 = vector.extract_strided_slice %0 {offsets = [0, 0], sizes = [56, 256], strides = [1, 1]} : vector<64x256xbf16> to vector<56x256xbf16>
    %23 = arith.extf %22 : vector<56x256xbf16> to vector<56x256xf32>
    %24 = vector.shape_cast %23 : vector<56x256xf32> to vector<7x8x256xf32>
    %cst_9 = arith.constant 0.000000e+00 : f32
    %25 = vector.broadcast %cst_9 : f32 to vector<1x256xf32>
    %26 = vector.extract_strided_slice %21 {offsets = [0, 0], sizes = [224, 256], strides = [1, 1]} : vector<352x256xf32> to vector<224x256xf32>
    %27 = vector.shape_cast %26 : vector<224x256xf32> to vector<4x7x8x256xf32>
    %28 = vector.extract_strided_slice %27 {offsets = [0, 0, 0, 0], sizes = [4, 1, 8, 256], strides = [1, 1, 1, 1]} : vector<4x7x8x256xf32> to vector<4x1x8x256xf32>
    %29 = vector.shape_cast %28 : vector<4x1x8x256xf32> to vector<4x8x256xf32>
    %30 = vector.extract_strided_slice %24 {offsets = [0, 0, 0], sizes = [1, 8, 256], strides = [1, 1, 1]} : vector<7x8x256xf32> to vector<1x8x256xf32>
    %31 = vector.shape_cast %30 : vector<1x8x256xf32> to vector<8x256xf32>
    %32 = vector.shape_cast %31 : vector<8x256xf32> to vector<1x8x256xf32>
    %33 = vector.broadcast %32 : vector<1x8x256xf32> to vector<4x8x256xf32>
    %34 = arith.mulf %29, %33 : vector<4x8x256xf32>
    %35 = vector.extract_strided_slice %27 {offsets = [0, 1, 0, 0], sizes = [4, 1, 8, 256], strides = [1, 1, 1, 1]} : vector<4x7x8x256xf32> to vector<4x1x8x256xf32>
    %36 = vector.shape_cast %35 : vector<4x1x8x256xf32> to vector<4x8x256xf32>
    %37 = vector.extract_strided_slice %24 {offsets = [1, 0, 0], sizes = [1, 8, 256], strides = [1, 1, 1]} : vector<7x8x256xf32> to vector<1x8x256xf32>
    %38 = vector.shape_cast %37 : vector<1x8x256xf32> to vector<8x256xf32>
    %39 = vector.shape_cast %38 : vector<8x256xf32> to vector<1x8x256xf32>
    %40 = vector.broadcast %39 : vector<1x8x256xf32> to vector<4x8x256xf32>
    %41 = arith.mulf %36, %40 : vector<4x8x256xf32>
    %42 = arith.addf %34, %41 : vector<4x8x256xf32>
    %43 = vector.extract_strided_slice %27 {offsets = [0, 2, 0, 0], sizes = [4, 1, 8, 256], strides = [1, 1, 1, 1]} : vector<4x7x8x256xf32> to vector<4x1x8x256xf32>
    %44 = vector.shape_cast %43 : vector<4x1x8x256xf32> to vector<4x8x256xf32>
    %45 = vector.extract_strided_slice %24 {offsets = [2, 0, 0], sizes = [1, 8, 256], strides = [1, 1, 1]} : vector<7x8x256xf32> to vector<1x8x256xf32>
    %46 = vector.shape_cast %45 : vector<1x8x256xf32> to vector<8x256xf32>
    %47 = vector.shape_cast %46 : vector<8x256xf32> to vector<1x8x256xf32>
    %48 = vector.broadcast %47 : vector<1x8x256xf32> to vector<4x8x256xf32>
    %49 = arith.mulf %44, %48 : vector<4x8x256xf32>
    %50 = arith.addf %42, %49 : vector<4x8x256xf32>
    %51 = vector.extract_strided_slice %27 {offsets = [0, 3, 0, 0], sizes = [4, 1, 8, 256], strides = [1, 1, 1, 1]} : vector<4x7x8x256xf32> to vector<4x1x8x256xf32>
    %52 = vector.shape_cast %51 : vector<4x1x8x256xf32> to vector<4x8x256xf32>
    %53 = vector.extract_strided_slice %24 {offsets = [3, 0, 0], sizes = [1, 8, 256], strides = [1, 1, 1]} : vector<7x8x256xf32> to vector<1x8x256xf32>
    %54 = vector.shape_cast %53 : vector<1x8x256xf32> to vector<8x256xf32>
    %55 = vector.shape_cast %54 : vector<8x256xf32> to vector<1x8x256xf32>
    %56 = vector.broadcast %55 : vector<1x8x256xf32> to vector<4x8x256xf32>
    %57 = arith.mulf %52, %56 : vector<4x8x256xf32>
    %58 = arith.addf %50, %57 : vector<4x8x256xf32>
    %59 = vector.extract_strided_slice %27 {offsets = [0, 4, 0, 0], sizes = [4, 1, 8, 256], strides = [1, 1, 1, 1]} : vector<4x7x8x256xf32> to vector<4x1x8x256xf32>
    %60 = vector.shape_cast %59 : vector<4x1x8x256xf32> to vector<4x8x256xf32>
    %61 = vector.extract_strided_slice %24 {offsets = [4, 0, 0], sizes = [1, 8, 256], strides = [1, 1, 1]} : vector<7x8x256xf32> to vector<1x8x256xf32>
    %62 = vector.shape_cast %61 : vector<1x8x256xf32> to vector<8x256xf32>
    %63 = vector.shape_cast %62 : vector<8x256xf32> to vector<1x8x256xf32>
    %64 = vector.broadcast %63 : vector<1x8x256xf32> to vector<4x8x256xf32>
    %65 = arith.mulf %60, %64 : vector<4x8x256xf32>
    %66 = arith.addf %58, %65 : vector<4x8x256xf32>
    %67 = vector.extract_strided_slice %27 {offsets = [0, 5, 0, 0], sizes = [4, 1, 8, 256], strides = [1, 1, 1, 1]} : vector<4x7x8x256xf32> to vector<4x1x8x256xf32>
    %68 = vector.shape_cast %67 : vector<4x1x8x256xf32> to vector<4x8x256xf32>
    %69 = vector.extract_strided_slice %24 {offsets = [5, 0, 0], sizes = [1, 8, 256], strides = [1, 1, 1]} : vector<7x8x256xf32> to vector<1x8x256xf32>
    %70 = vector.shape_cast %69 : vector<1x8x256xf32> to vector<8x256xf32>
    %71 = vector.shape_cast %70 : vector<8x256xf32> to vector<1x8x256xf32>
    %72 = vector.broadcast %71 : vector<1x8x256xf32> to vector<4x8x256xf32>
    %73 = arith.mulf %68, %72 : vector<4x8x256xf32>
    %74 = arith.addf %66, %73 : vector<4x8x256xf32>
    %75 = vector.extract_strided_slice %27 {offsets = [0, 6, 0, 0], sizes = [4, 1, 8, 256], strides = [1, 1, 1, 1]} : vector<4x7x8x256xf32> to vector<4x1x8x256xf32>
    %76 = vector.shape_cast %75 : vector<4x1x8x256xf32> to vector<4x8x256xf32>
    %77 = vector.extract_strided_slice %24 {offsets = [6, 0, 0], sizes = [1, 8, 256], strides = [1, 1, 1]} : vector<7x8x256xf32> to vector<1x8x256xf32>
    %78 = vector.shape_cast %77 : vector<1x8x256xf32> to vector<8x256xf32>
    %79 = vector.shape_cast %78 : vector<8x256xf32> to vector<1x8x256xf32>
    %80 = vector.broadcast %79 : vector<1x8x256xf32> to vector<4x8x256xf32>
    %81 = arith.mulf %76, %80 : vector<4x8x256xf32>
    %82 = arith.addf %74, %81 : vector<4x8x256xf32>
    %83 = vector.shape_cast %82 : vector<4x8x256xf32> to vector<32x256xf32>
    %84 = vector.extract_strided_slice %7 {offsets = [0, 0], sizes = [32, 1], strides = [1, 1]} : vector<64x1xf32> to vector<32x1xf32>
    %85 = vector.broadcast %84 : vector<32x1xf32> to vector<32x256xf32>
    %86 = arith.mulf %85, %83 : vector<32x256xf32>
    %cst_10 = arith.constant dense<0.000000e+00> : vector<256xf32>
    %87 = vector.multi_reduction <add>, %86, %cst_10 [0] : vector<32x256xf32> to vector<256xf32>
    %88 = vector.shape_cast %87 : vector<256xf32> to vector<1x256xf32>
    %89 = arith.addf %25, %88 : vector<1x256xf32>
    %90 = vector.extract_strided_slice %21 {offsets = [224, 0], sizes = [128, 256], strides = [1, 1]} : vector<352x256xf32> to vector<128x256xf32>
    %91 = vector.shape_cast %90 : vector<128x256xf32> to vector<4x4x8x256xf32>
    %92 = vector.extract_strided_slice %91 {offsets = [0, 0, 0, 0], sizes = [4, 1, 8, 256], strides = [1, 1, 1, 1]} : vector<4x4x8x256xf32> to vector<4x1x8x256xf32>
    %93 = vector.shape_cast %92 : vector<4x1x8x256xf32> to vector<4x8x256xf32>
    %94 = vector.extract_strided_slice %82 {offsets = [0, 0, 0], sizes = [1, 8, 256], strides = [1, 1, 1]} : vector<4x8x256xf32> to vector<1x8x256xf32>
    %95 = vector.shape_cast %94 : vector<1x8x256xf32> to vector<8x256xf32>
    %96 = vector.shape_cast %95 : vector<8x256xf32> to vector<1x8x256xf32>
    %97 = vector.broadcast %96 : vector<1x8x256xf32> to vector<4x8x256xf32>
    %98 = arith.mulf %93, %97 : vector<4x8x256xf32>
    %99 = vector.extract_strided_slice %91 {offsets = [0, 1, 0, 0], sizes = [4, 1, 8, 256], strides = [1, 1, 1, 1]} : vector<4x4x8x256xf32> to vector<4x1x8x256xf32>
    %100 = vector.shape_cast %99 : vector<4x1x8x256xf32> to vector<4x8x256xf32>
    %101 = vector.extract_strided_slice %82 {offsets = [1, 0, 0], sizes = [1, 8, 256], strides = [1, 1, 1]} : vector<4x8x256xf32> to vector<1x8x256xf32>
    %102 = vector.shape_cast %101 : vector<1x8x256xf32> to vector<8x256xf32>
    %103 = vector.shape_cast %102 : vector<8x256xf32> to vector<1x8x256xf32>
    %104 = vector.broadcast %103 : vector<1x8x256xf32> to vector<4x8x256xf32>
    %105 = arith.mulf %100, %104 : vector<4x8x256xf32>
    %106 = arith.addf %98, %105 : vector<4x8x256xf32>
    %107 = vector.extract_strided_slice %91 {offsets = [0, 2, 0, 0], sizes = [4, 1, 8, 256], strides = [1, 1, 1, 1]} : vector<4x4x8x256xf32> to vector<4x1x8x256xf32>
    %108 = vector.shape_cast %107 : vector<4x1x8x256xf32> to vector<4x8x256xf32>
    %109 = vector.extract_strided_slice %82 {offsets = [2, 0, 0], sizes = [1, 8, 256], strides = [1, 1, 1]} : vector<4x8x256xf32> to vector<1x8x256xf32>
    %110 = vector.shape_cast %109 : vector<1x8x256xf32> to vector<8x256xf32>
    %111 = vector.shape_cast %110 : vector<8x256xf32> to vector<1x8x256xf32>
    %112 = vector.broadcast %111 : vector<1x8x256xf32> to vector<4x8x256xf32>
    %113 = arith.mulf %108, %112 : vector<4x8x256xf32>
    %114 = arith.addf %106, %113 : vector<4x8x256xf32>
    %115 = vector.extract_strided_slice %91 {offsets = [0, 3, 0, 0], sizes = [4, 1, 8, 256], strides = [1, 1, 1, 1]} : vector<4x4x8x256xf32> to vector<4x1x8x256xf32>
    %116 = vector.shape_cast %115 : vector<4x1x8x256xf32> to vector<4x8x256xf32>
    %117 = vector.extract_strided_slice %82 {offsets = [3, 0, 0], sizes = [1, 8, 256], strides = [1, 1, 1]} : vector<4x8x256xf32> to vector<1x8x256xf32>
    %118 = vector.shape_cast %117 : vector<1x8x256xf32> to vector<8x256xf32>
    %119 = vector.shape_cast %118 : vector<8x256xf32> to vector<1x8x256xf32>
    %120 = vector.broadcast %119 : vector<1x8x256xf32> to vector<4x8x256xf32>
    %121 = arith.mulf %116, %120 : vector<4x8x256xf32>
    %122 = arith.addf %114, %121 : vector<4x8x256xf32>
    %123 = vector.shape_cast %122 : vector<4x8x256xf32> to vector<32x256xf32>
    %124 = vector.extract_strided_slice %7 {offsets = [32, 0], sizes = [32, 1], strides = [1, 1]} : vector<64x1xf32> to vector<32x1xf32>
    %125 = vector.broadcast %124 : vector<32x1xf32> to vector<32x256xf32>
    %126 = arith.mulf %125, %123 : vector<32x256xf32>
    %cst_11 = arith.constant dense<0.000000e+00> : vector<256xf32>
    %127 = vector.multi_reduction <add>, %126, %cst_11 [0] : vector<32x256xf32> to vector<256xf32>
    %128 = vector.shape_cast %127 : vector<256xf32> to vector<1x256xf32>
    %129 = arith.addf %89, %128 : vector<1x256xf32>
    %130 = arith.addf %20, %19 : vector<1x256xf32>
    %131 = arith.addf %130, %129 : vector<1x256xf32>
    %c0_12 = arith.constant 0 : index
    %c0_13 = arith.constant 0 : index
    %132 = vector.load %arg3[%c0_12, %c0_13] : memref<1x256xf32, #tpu.memory_space<vmem>>, vector<1x256xf32>
    tpu.vector_store %arg3[%c0_12, %c0_13], %131 {strides = array<i32>} : memref<1x256xf32, #tpu.memory_space<vmem>>, vector<1x256xf32>,
    return
  }
  func.func @transform_0(%arg0: i32) -> (i32, i32) {
    %c0_i32 = arith.constant 0 : i32
    %c0_i32_0 = arith.constant 0 : i32
    return %c0_i32, %arg0 : i32, i32
  }
  func.func @transform_1(%arg0: i32) -> (i32, i32) {
    %c0_i32 = arith.constant 0 : i32
    %c0_i32_0 = arith.constant 0 : i32
    %c0_i32_1 = arith.constant 0 : i32
    return %c0_i32, %c0_i32_0 : i32, i32
  }
  func.func @transform_2(%arg0: i32) -> (i32, i32) {
    %c0_i32 = arith.constant 0 : i32
    %c0_i32_0 = arith.constant 0 : i32
    return %c0_i32, %arg0 : i32, i32
  }
}

</mosaic_0001>

<llo_original>
// kernel: mul.1
$region0: #{mul.1}
  %s0 = inlined_call_operand.vmem [shape: f32[4,7,7], index: 0, kind: input, shape index: {}]
  %s1 = inlined_call_operand.vmem [shape: f32[28,7], index: 1, kind: output, shape index: {}]
  $region1: #{mul.1} parent=0
    #allocation0 [shape = 'u8[28672]{0}', space=vmem, size = 0x7000, scoped, tag = 'scoped mem for input reshape']
    %s3 = sshll.u32 1, 4
    %s4 = ssub.s32 %s3, 1
    %s5 = smul.addr 4, 6
    %s6 = scalar_lea.vmem %s0, %s5
    %v7 = vld [vmem:[%s6] sm:%s4]
    %s8 = scalar_lea.vmem [#allocation0], 48
    %9 = vst [vmem:[%s8] sm:%s4] %v7
    %s10 = smul.addr 4, 5
    %s11 = scalar_lea.vmem %s0, %s10
    %v12 = vld [vmem:[%s11] sm:%s4]
    %s13 = scalar_lea.vmem [#allocation0], 40
    %14 = vst [vmem:[%s13] sm:%s4] %v12
    %s15 = smul.addr 4, 4
    %s16 = scalar_lea.vmem %s0, %s15
    %v17 = vld [vmem:[%s16] sm:%s4]
    %s18 = scalar_lea.vmem [#allocation0], 32
    %19 = vst [vmem:[%s18] sm:%s4] %v17
    %s20 = smul.addr 4, 3
    %s21 = scalar_lea.vmem %s0, %s20
    %v22 = vld [vmem:[%s21] sm:%s4]
    %s23 = scalar_lea.vmem [#allocation0], 24
    %24 = vst [vmem:[%s23] sm:%s4] %v22
    %s25 = smul.addr 4, 2
    %s26 = scalar_lea.vmem %s0, %s25
    %v27 = vld [vmem:[%s26] sm:%s4]
    %s28 = scalar_lea.vmem [#allocation0], 16
    %29 = vst [vmem:[%s28] sm:%s4] %v27
    %s30 = scalar_lea.vmem %s0, 4
    %v31 = vld [vmem:[%s30] sm:%s4]
    %s32 = scalar_lea.vmem [#allocation0], 8
    %33 = vst [vmem:[%s32] sm:%s4] %v31
    %v34 = vld [vmem:[%s0] sm:%s4]
    %35 = vst [vmem:[#allocation0] sm:%s4] %v34
    %v36 = vld [vmem:[#allocation0] ss:$8 sm:$0xf]
    %v37 = vld [vmem:[#allocation0] ss:$8 sm:$0x70]
    %vm38 = vcmask 1046532
    %v39 = vsel %vm38, %v37, %v36
    %vm40 = vcmask 56320
    %41 = vst.msk [vmem:[%s1] sm:$0x7f] %vm40, %v39
    %s42 = scalar_lea.vmem [#allocation0], 3
    %v43 = vld [vmem:[%s42] ss:$8 sm:$0xf]
    %s44 = scalar_lea.vmem [#allocation0], 3
    %v45 = vld [vmem:[%s44] ss:$8 sm:$0x70]
    %vm46 = vcmask 1046532
    %v47 = vsel %vm46, %v45, %v43
    %48 = vrot.lane.b32.xlu0 %v47, 21
    %v49 = vpop.permute.xlu0 %48
    %vm50 = vcmask 228520
    %51 = vst.msk [vmem:[%s1] sm:$0x7f] %vm50, %v49
    %s52 = scalar_lea.vmem [#allocation0], 2
    %v53 = vld [vmem:[%s52] ss:$8 sm:$0xf]
    %s54 = scalar_lea.vmem [#allocation0], 2
    %v55 = vld [vmem:[%s54] ss:$8 sm:$0x70]
    %vm56 = vcmask 1046532
    %v57 = vsel %vm56, %v55, %v53
    %58 = vrot.lane.b32.xlu0 %v57, 14
    %v59 = vpop.permute.xlu0 %58
    %vm60 = vcmask 171120
    %61 = vst.msk [vmem:[%s1] sm:$0x7f] %vm60, %v59
    %s62 = scalar_lea.vmem [#allocation0], 1
    %v63 = vld [vmem:[%s62] ss:$8 sm:$0xf]
    %s64 = scalar_lea.vmem [#allocation0], 1
    %v65 = vld [vmem:[%s64] ss:$8 sm:$0x70]
    %vm66 = vcmask 1046532
    %v67 = vsel %vm66, %v65, %v63
    %68 = vrot.lane.b32.xlu0 %v67, 7
    %v69 = vpop.permute.xlu0 %68
    %vm70 = vcmask 113720
    %71 = vst.msk [vmem:[%s1] sm:$0x7f] %vm70, %v69

// kernel: xdeepfm_pallas.1
$region0: #{xdeepfm_pallas.1}
  #allocation0 [shape = 'u32[]', space=smem, size = 0x4, offset = 0x4, fixed_abs, tag = 'smem constant byte address 0x4 - core index']
  #allocation1 [shape = 'u32[144,128]{1,0:T(1,128)}', space=vmem, size = 0x12000, scoped, tag = 'internal scratch']
  %s0 = inlined_call_operand.vmem [shape: bf16[64,512], index: 0, kind: input, shape index: {}]
  %s1 = inlined_call_operand.vmem [shape: bf16[552,64], index: 1, kind: input, shape index: {}]
  %s2 = inlined_call_operand.vmem [shape: f32[1,512], index: 2, kind: output, shape index: {}]
  %s3 = sld [smem:[#allocation0]]
  $region79: #{xdeepfm_pallas.1} parent=0
    _
  %s5 = ssub.s32 1, %s3
  %s6 = scalar_select 0, %s5, %s3
  $region1: #{xdeepfm_pallas.1} parent=0
    #allocation2 [shape = 'u8[65536]{0}', space=vmem, size = 0x10000, scoped, tag = 'input window, operand 0']
    loop: start=0, step=1, limit=4
    $region2: #{xdeepfm_pallas.1} parent=1 // loop_pre_header
      _
    $region3: #{xdeepfm_pallas.1} parent=1 // loop_header
      %s8 = sphi 0, %s12
      %p9 = scmp.ge.s32.totalorder %s8, 4
      %s18 = sphi 0, %s20
      %s21 = sphi 0, %s18
      %s22 = sphi 0, %s21
      %s38 = sphi 0, %s22
      %s42 = sphi 0, %s42
      %s44 = sphi 0, %s42
      %s45 = sphi 0, %s44
      %s59 = sphi 0, %s45
      %s65 = sphi 0, %s67
      %s68 = sphi 0, %s65
      %s69 = sphi 0, %s68
      %s85 = sphi 0, %s69
    $region4: #{xdeepfm_pallas.1} parent=1 // loop_header_branch
      %11 = sbr.rel (%p9) target = $region8
    $region5: #{xdeepfm_pallas.1} parent=1 // loop_body
      %s13 = ssub.s32 %s8, 1
      %s14 = ssub.s32 %s8, 2
      %s15 = sadd.s32 %s8, 1
      %s16 = ssub.s32 %s8, %s15
      %p17 = scmp.eq.s32.totalorder %s16, 0
      %s19 = sadd.s32 %s18, 1
      %s20 = scalar_select %p17, %s18, %s19
      %p23 = pneg %p17
      %p24 = scmp.eq.s32.totalorder %s8, 1
      %p25 = por %p23, %p24
      %p26 = scmp.ne.s32.totalorder %s18, %s21
      %p27 = scmp.eq.s32.totalorder %s8, 0
      %p28 = por %p26, %p27
      %p29 = scmp.ne.s32.totalorder %s18, %s21
      %p30 = scmp.eq.s32.totalorder %s13, 1
      %p31 = por %p29, %p30
      %p32 = scmp.ne.s32.totalorder %s21, %s22
      %p33 = scmp.eq.s32.totalorder %s13, 0
      %p34 = por %p32, %p33
      %p35 = scmp.ne.s32.totalorder %s21, %s22
      %p36 = scmp.eq.s32.totalorder %s14, 1
      %p37 = por %p35, %p36
      %p39 = scmp.ne.s32.totalorder %s22, %s38
      %p40 = scmp.eq.s32.totalorder %s14, 0
      %p41 = por %p39, %p40
      %s43 = sadd.s32 %s42, 1
      %p46 = scmp.eq.s32.totalorder %s8, 1
      %p47 = scmp.ne.s32.totalorder %s42, %s44
      %p48 = scmp.eq.s32.totalorder %s8, 0
      %p49 = por %p47, %p48
      %p50 = scmp.ne.s32.totalorder %s42, %s44
      %p51 = scmp.eq.s32.totalorder %s13, 1
      %p52 = por %p50, %p51
      %p53 = scmp.ne.s32.totalorder %s44, %s45
      %p54 = scmp.eq.s32.totalorder %s13, 0
      %p55 = por %p53, %p54
      %p56 = scmp.ne.s32.totalorder %s44, %s45
      %p57 = scmp.eq.s32.totalorder %s14, 1
      %p58 = por %p56, %p57
      %p60 = scmp.ne.s32.totalorder %s45, %s59
      %p61 = scmp.eq.s32.totalorder %s14, 0
      %p62 = por %p60, %p61
      %s63 = ssub.s32 %s8, %s15
      %p64 = scmp.eq.s32.totalorder %s63, 0
      %s66 = sadd.s32 %s65, 1
      %s67 = scalar_select %p64, %s65, %s66
      %p70 = pneg %p64
      %p71 = scmp.eq.s32.totalorder %s8, 1
      %p72 = por %p70, %p71
      %p73 = scmp.ne.s32.totalorder %s65, %s68
      %p74 = scmp.eq.s32.totalorder %s8, 0
      %p75 = por %p73, %p74
      %p76 = scmp.ne.s32.totalorder %s65, %s68
      %p77 = scmp.eq.s32.totalorder %s13, 1
      %p78 = por %p76, %p77
      %p79 = scmp.ne.s32.totalorder %s68, %s69
      %p80 = scmp.eq.s32.totalorder %s13, 0
      %p81 = por %p79, %p80
      %p82 = scmp.ne.s32.totalorder %s68, %s69
      %p83 = scmp.eq.s32.totalorder %s14, 1
      %p84 = por %p82, %p83
      %p86 = scmp.ne.s32.totalorder %s69, %s85
      %p87 = scmp.eq.s32.totalorder %s14, 0
      %p88 = por %p86, %p87
      %p89 = scmp.le.s32.totalorder 1, %s8
      %p90 = scmp.lt.s32.totalorder %s8, 3
      %p91 = pnand %p89, %p90
      %p92 = pneg %p91
      // Predicated region
      $region9: #{xdeepfm_pallas.1} parent=5 // pred_check
        _
      $region10: #{xdeepfm_pallas.1} parent=5 // pred_check_branch
        %94 = sbr.rel (%p91) target = $region12
      $region11: #{xdeepfm_pallas.1} parent=5 // pred_region
        %s95 = ssub.s32 %s8, 1
        // Predicated region
        $region13: #{xdeepfm_pallas.1} parent=11 // pred_check
          %p96 = pneg %p55
        $region14: #{xdeepfm_pallas.1} parent=11 // pred_check_branch
          %98 = sbr.rel (%p96) target = $region16
        $region15: #{xdeepfm_pallas.1} parent=11 // pred_region
          _
        $region16: #{xdeepfm_pallas.1} parent=11 // pred_fallthru
          _
      $region12: #{xdeepfm_pallas.1} parent=5 // pred_fallthru
        _
      %p99 = scmp.lt.s32.totalorder %s8, 2
      // Predicated region
      $region17: #{xdeepfm_pallas.1} parent=5 // pred_check
        %p100 = pneg %p99
      $region18: #{xdeepfm_pallas.1} parent=5 // pred_check_branch
        %102 = sbr.rel (%p100) target = $region20
      $region19: #{xdeepfm_pallas.1} parent=5 // pred_region
        // Predicated region
        $region21: #{xdeepfm_pallas.1} parent=19 // pred_check
          %p103 = pneg %p28
        $region22: #{xdeepfm_pallas.1} parent=19 // pred_check_branch
          %105 = sbr.rel (%p103) target = $region24
        $region23: #{xdeepfm_pallas.1} parent=19 // pred_region
          %s106 = sand.u32 %s18, 1
          %s107 = sand.u32 %s18, 1
          %s108 = smul.addr %s107, 64
          %s109 = scalar_lea.vmem [#allocation2], %s108
          %s110 = smul.u32 2, %s8
          %s111 = smul.addr %s110, 4
          %s112 = scalar_lea.vmem %s0, %s111
          // Predicated region
          $region25: #{xdeepfm_pallas.1} parent=23 // pred_check
            _
          $region26: #{xdeepfm_pallas.1} parent=23 // pred_check_branch
            %114 = sbr.rel (0) target = $region28
          $region27: #{xdeepfm_pallas.1} parent=23 // pred_region
            // Predicated region
            $region29: #{xdeepfm_pallas.1} parent=27 // pred_check
              _
            $region30: #{xdeepfm_pallas.1} parent=27 // pred_check_branch
              %116 = sbr.rel (0) target = $region32
            $region31: #{xdeepfm_pallas.1} parent=27 // pred_region
              // Predicated region
              $region44: #{xdeepfm_pallas.1} parent=31 // pred_check
                _
              $region45: #{xdeepfm_pallas.1} parent=31 // pred_check_branch
                %146 = sbr.rel (0) target = $region47
              $region46: #{xdeepfm_pallas.1} parent=31 // pred_region
                loop: start=0, step=1, limit=1
                $region48: #{xdeepfm_pallas.1} parent=46 // loop_pre_header
                  _
                $region49: #{xdeepfm_pallas.1} parent=46 // loop_header
                  %s148 = sphi 0, %s152
                  %p149 = scmp.ge.s32.totalorder %s148, 1
                  %s153 = sphi %s112, %s112
                  %s154 = sphi %s109, %s109
                $region50: #{xdeepfm_pallas.1} parent=46 // loop_header_branch
                  %151 = sbr.rel (%p149) target = $region54
                $region51: #{xdeepfm_pallas.1} parent=46 // loop_body
                  %v155 = vld [vmem:[%s153] sm:$0xff]
                  %156 = vst [vmem:[%s154] sm:$0xff] %v155
                  %v157 = vld [vmem:[%s153 + $0x10] sm:$0xff]
                  %158 = vst [vmem:[%s154 + $0x8] sm:$0xff] %v157
                  %v159 = vld [vmem:[%s153 + $0x20] sm:$0xff]
                  %160 = vst [vmem:[%s154 + $0x10] sm:$0xff] %v159
                  %v161 = vld [vmem:[%s153 + $0x30] sm:$0xff]
                  %162 = vst [vmem:[%s154 + $0x18] sm:$0xff] %v161
                  %v163 = vld [vmem:[%s153 + $0x40] sm:$0xff]
                  %164 = vst [vmem:[%s154 + $0x20] sm:$0xff] %v163
                  %v165 = vld [vmem:[%s153 + $0x50] sm:$0xff]
                  %166 = vst [vmem:[%s154 + $0x28] sm:$0xff] %v165
                  %v167 = vld [vmem:[%s153 + $0x60] sm:$0xff]
                  %168 = vst [vmem:[%s154 + $0x30] sm:$0xff] %v167
                  %v169 = vld [vmem:[%s153 + $0x70] sm:$0xff]
                  %170 = vst [vmem:[%s154 + $0x38] sm:$0xff] %v169
                $region52: #{xdeepfm_pallas.1} parent=46 // loop_footer
                  %s152 = sadd.s32 1, %s148
                $region53: #{xdeepfm_pallas.1} parent=46 // loop_footer_branch
                  %147 = sbr.rel target = $region49
                $region54: #{xdeepfm_pallas.1} parent=46 // loop_exit
                  _
              $region47: #{xdeepfm_pallas.1} parent=31 // pred_fallthru
                _
              // Predicated region
              $region55: #{xdeepfm_pallas.1} parent=31 // pred_check
                _
              $region56: #{xdeepfm_pallas.1} parent=31 // pred_check_branch
                %172 = sbr.rel target = $region58
              $region57: #{xdeepfm_pallas.1} parent=31 // pred_region
                _
              $region58: #{xdeepfm_pallas.1} parent=31 // pred_fallthru
                _
            $region32: #{xdeepfm_pallas.1} parent=27 // pred_fallthru
              _
            // Predicated region
            $region33: #{xdeepfm_pallas.1} parent=27 // pred_check
              _
            $region34: #{xdeepfm_pallas.1} parent=27 // pred_check_branch
              %118 = sbr.rel target = $region36
            $region35: #{xdeepfm_pallas.1} parent=27 // pred_region
              %s120 = ssub.s32 256, 1
              loop: start=0, step=1, limit=1
              $region37: #{xdeepfm_pallas.1} parent=35 // loop_pre_header
                _
              $region38: #{xdeepfm_pallas.1} parent=35 // loop_header
                %s122 = sphi 0, %s126
                %p123 = scmp.ge.s32.totalorder %s122, 1
                %s127 = sphi %s112, %s112
                %s128 = sphi %s109, %s109
              $region39: #{xdeepfm_pallas.1} parent=35 // loop_header_branch
                %125 = sbr.rel (%p123) target = $region43
              $region40: #{xdeepfm_pallas.1} parent=35 // loop_body
                %v129 = vld [vmem:[%s127] sm:%s120]
                %130 = vst [vmem:[%s128] sm:%s120] %v129
                %v131 = vld [vmem:[%s127 + $0x10] sm:%s120]
                %132 = vst [vmem:[%s128 + $0x8] sm:%s120] %v131
                %v133 = vld [vmem:[%s127 + $0x20] sm:%s120]
                %134 = vst [vmem:[%s128 + $0x10] sm:%s120] %v133
                %v135 = vld [vmem:[%s127 + $0x30] sm:%s120]
                %136 = vst [vmem:[%s128 + $0x18] sm:%s120] %v135
                %v137 = vld [vmem:[%s127 + $0x40] sm:%s120]
                %138 = vst [vmem:[%s128 + $0x20] sm:%s120] %v137
                %v139 = vld [vmem:[%s127 + $0x50] sm:%s120]
                %140 = vst [vmem:[%s128 + $0x28] sm:%s120] %v139
                %v141 = vld [vmem:[%s127 + $0x60] sm:%s120]
                %142 = vst [vmem:[%s128 + $0x30] sm:%s120] %v141
                %v143 = vld [vmem:[%s127 + $0x70] sm:%s120]
                %144 = vst [vmem:[%s128 + $0x38] sm:%s120] %v143
              $region41: #{xdeepfm_pallas.1} parent=35 // loop_footer
                %s126 = sadd.s32 1, %s122
              $region42: #{xdeepfm_pallas.1} parent=35 // loop_footer_branch
                %121 = sbr.rel target = $region38
              $region43: #{xdeepfm_pallas.1} parent=35 // loop_exit
                _
            $region36: #{xdeepfm_pallas.1} parent=27 // pred_fallthru
              _
          $region28: #{xdeepfm_pallas.1} parent=23 // pred_fallthru
            _
          %173 = vnop
        $region24: #{xdeepfm_pallas.1} parent=19 // pred_fallthru
          _
      $region20: #{xdeepfm_pallas.1} parent=5 // pred_fallthru
        _
      %p174 = scmp.le.s32.totalorder 1, %s8
      %p175 = scmp.lt.s32.totalorder %s8, 3
      %p176 = pnand %p174, %p175
      %p177 = pneg %p176
      // Predicated region
      $region59: #{xdeepfm_pallas.1} parent=5 // pred_check
        _
      $region60: #{xdeepfm_pallas.1} parent=5 // pred_check_branch
        %179 = sbr.rel (%p176) target = $region62
      $region61: #{xdeepfm_pallas.1} parent=5 // pred_region
        %s180 = ssub.s32 %s8, 1
        %s181 = sand.u32 %s21, 1
        %s182 = sand.u32 %s21, 1
        %s183 = smul.addr %s182, 64
        %s184 = scalar_lea.vmem [#allocation2], %s183
        // Predicated region
        $region63: #{xdeepfm_pallas.1} parent=61 // pred_check
          %p185 = pneg %p34
        $region64: #{xdeepfm_pallas.1} parent=61 // pred_check_branch
          %187 = sbr.rel (%p185) target = $region66
        $region65: #{xdeepfm_pallas.1} parent=61 // pred_region
          _
        $region66: #{xdeepfm_pallas.1} parent=61 // pred_fallthru
          _
        %s188 = sand.u32 %s21, 1
        %s189 = sand.u32 %s21, 1
        %s190 = smul.addr %s189, 64
        %s191 = scalar_lea.vmem [#allocation2], %s190
        %p192 = pneg %p34
        %p193 = pneg %p31
        %p194 = pneg %p55
        %p195 = pneg %p52
        %p196 = pneg %p81
        %p197 = pneg %p78
        %s198 = smul.u32 2, %s13
        %p199 = scmp.lt.s32.totalorder %s198, 3
        %s200 = scalar_select %p199, %s198, 3
        %s201 = scalar_lea.vmem %s2, %s200
        %s202 = smul.u32 2, %s13
        %s203 = smul.u32 2, %s13
        %p204 = scmp.lt.s32.totalorder %s203, 3
        %s205 = scalar_select %p204, %s203, 3
        %s206 = scalar_lea.vmem %s2, %s205
        %s207 = smul.u32 2, %s13
        %v209 = vld [vmem:[%s184] sm:$0xff]
        %v210 = vld [vmem:[%s184 + $0x8] sm:$0xff]
        %v211 = vld [vmem:[%s184 + $0x10] sm:$0xff]
        %v212 = vld [vmem:[%s184 + $0x18] sm:$0xff]
        %v213 = vld [vmem:[%s184 + $0x20] sm:$0xff]
        %v214 = vld [vmem:[%s184 + $0x28] sm:$0xff]
        %v215 = vld [vmem:[%s184 + $0x30] sm:$0xff]
        %v216 = vld [vmem:[%s184 + $0x38] sm:$0xff]
        %v217 = vld [vmem:[%s1] sm:$0xf]
        %v218 = vld [vmem:[%s1 + $0x4] sm:$0xf]
        %v219 = vld [vmem:[%s1 + $0x8] sm:$0xf]
        %v220 = vld [vmem:[%s1 + $0xc] sm:$0xf]
        %v221 = vld [vmem:[%s1 + $0x10] sm:$0xf]
        %v222 = vld [vmem:[%s1 + $0x14] sm:$0xf]
        %v223 = vld [vmem:[%s1 + $0x18] sm:$0xf]
        %v224 = vld [vmem:[%s1 + $0x1c] sm:$0xf]
        %v225 = vld [vmem:[%s1 + $0x20] sm:$0xf]
        %v226 = vld [vmem:[%s1 + $0x24] sm:$0xf]
        %v227 = vld [vmem:[%s1 + $0x28] sm:$0xf]
        %v228 = vld [vmem:[%s1 + $0x2c] sm:$0xf]
        %v229 = vld [vmem:[%s1 + $0x30] sm:$0xf]
        %v230 = vld [vmem:[%s1 + $0x34] sm:$0xf]
        %v231 = vld [vmem:[%s1 + $0x38] sm:$0xf]
        %v232 = vld [vmem:[%s1 + $0x3c] sm:$0xf]
        %v233 = vld [vmem:[%s1 + $0x40] sm:$0xf]
        %v234 = vld [vmem:[%s1 + $0x44] sm:$0xf]
        %v235 = vld [vmem:[%s1 + $0x48] sm:$0xf]
        %v236 = vld [vmem:[%s1 + $0x4c] sm:$0xf]
        %v237 = vld [vmem:[%s1 + $0x50] sm:$0xf]
        %v238 = vld [vmem:[%s1 + $0x54] sm:$0xf]
        %v239 = vld [vmem:[%s1 + $0x58] sm:$0xf]
        %v240 = vld [vmem:[%s1 + $0x5c] sm:$0xf]
        %v241 = vld [vmem:[%s1 + $0x60] sm:$0xf]
        %v242 = vld [vmem:[%s1 + $0x64] sm:$0xf]
        %v243 = vld [vmem:[%s1 + $0x68] sm:$0xf]
        %v244 = vld [vmem:[%s1 + $0x6c] sm:$0xf]
        %v245 = vld [vmem:[%s1 + $0x70] sm:$0xf]
        %v246 = vld [vmem:[%s1 + $0x74] sm:$0xf]
        %v247 = vld [vmem:[%s1 + $0x78] sm:$0xf]
        %v248 = vld [vmem:[%s1 + $0x7c] sm:$0xf]
        %v249 = vld [vmem:[%s1 + $0x80] sm:$0xf]
        %v250 = vld [vmem:[%s1 + $0x84] sm:$0xf]
        %v251 = vld [vmem:[%s1 + $0x88] sm:$0xf]
        %v252 = vld [vmem:[%s1 + $0x8c] sm:$0xf]
        %v253 = vld [vmem:[%s1 + $0x90] sm:$0xf]
        %v254 = vld [vmem:[%s1 + $0x94] sm:$0xf]
        %v255 = vld [vmem:[%s1 + $0x98] sm:$0xf]
        %v256 = vld [vmem:[%s1 + $0x9c] sm:$0xf]
        %v257 = vld [vmem:[%s1 + $0xa0] sm:$0xf]
        %v258 = vld [vmem:[%s1 + $0xa4] sm:$0xf]
        %v259 = vld [vmem:[%s1 + $0xa8] sm:$0xf]
        %v260 = vld [vmem:[%s1 + $0xac] sm:$0xf]
        %v261 = vld [vmem:[%s1 + $0xb0] sm:$0xf]
        %v262 = vld [vmem:[%s1 + $0xb4] sm:$0xf]
        %v263 = vld [vmem:[%s1 + $0xb8] sm:$0xf]
        %v264 = vld [vmem:[%s1 + $0xbc] sm:$0xf]
        %v265 = vld [vmem:[%s1 + $0xc0] sm:$0xf]
        %v266 = vld [vmem:[%s1 + $0xc4] sm:$0xf]
        %v267 = vld [vmem:[%s1 + $0xc8] sm:$0xf]
        %v268 = vld [vmem:[%s1 + $0xcc] sm:$0xf]
        %v269 = vld [vmem:[%s1 + $0xd0] sm:$0xf]
        %v323 = vunpack.c.l.b16 %v217
        %v324 = vunpack.c.l.b16 %v218
        %v325 = vunpack.c.l.b16 %v219
        %v326 = vunpack.c.l.b16 %v220
        %v327 = vunpack.c.l.b16 %v221
        %v328 = vunpack.c.l.b16 %v222
        %v329 = vunpack.c.l.b16 %v223
        %v330 = vunpack.c.l.b16 %v224
        %v331 = vunpack.c.l.b16 %v225
        %v332 = vunpack.c.l.b16 %v226
        %v333 = vunpack.c.l.b16 %v227
        %v334 = vunpack.c.l.b16 %v228
        %v335 = vunpack.c.l.b16 %v229
        %v336 = vunpack.c.l.b16 %v230
        %v337 = vunpack.c.l.b16 %v231
        %v338 = vunpack.c.l.b16 %v232
        %v339 = vunpack.c.l.b16 %v233
        %v340 = vunpack.c.l.b16 %v234
        %v341 = vunpack.c.l.b16 %v235
        %v342 = vunpack.c.l.b16 %v236
        %v343 = vunpack.c.l.b16 %v237
        %v344 = vunpack.c.l.b16 %v238
        %v345 = vunpack.c.l.b16 %v239
        %v346 = vunpack.c.l.b16 %v240
        %v347 = vunpack.c.l.b16 %v241
        %v348 = vunpack.c.l.b16 %v242
        %v349 = vunpack.c.l.b16 %v243
        %v350 = vunpack.c.l.b16 %v244
        %v351 = vunpack.c.l.b16 %v245
        %v352 = vunpack.c.l.b16 %v246
        %v353 = vunpack.c.l.b16 %v247
        %v354 = vunpack.c.l.b16 %v248
        %v355 = vunpack.c.l.b16 %v249
        %v356 = vunpack.c.l.b16 %v250
        %v357 = vunpack.c.l.b16 %v251
        %v358 = vunpack.c.l.b16 %v252
        %v359 = vunpack.c.l.b16 %v253
        %v360 = vunpack.c.l.b16 %v254
        %v361 = vunpack.c.l.b16 %v255
        %v362 = vunpack.c.l.b16 %v256
        %v363 = vunpack.c.l.b16 %v257
        %v364 = vunpack.c.l.b16 %v258
        %v365 = vunpack.c.l.b16 %v259
        %v366 = vunpack.c.l.b16 %v260
        %v367 = vunpack.c.l.b16 %v261
        %v368 = vunpack.c.l.b16 %v262
        %v369 = vunpack.c.l.b16 %v263
        %v370 = vunpack.c.l.b16 %v264
        %v371 = vunpack.c.l.b16 %v265
        %v372 = vunpack.c.l.b16 %v266
        %v373 = vunpack.c.l.b16 %v267
        %v374 = vunpack.c.l.b16 %v268
        %v375 = vunpack.c.l.b16 %v269
        %v376 = vpack.c.b16 %v324, %v323
        %v377 = vpack.c.b16 %v326, %v325
        %v378 = vpack.c.b16 %v328, %v327
        %v379 = vpack.c.b16 %v330, %v329
        %v380 = vpack.c.b16 %v332, %v331
        %v381 = vpack.c.b16 %v334, %v333
        %v382 = vpack.c.b16 %v336, %v335
        %v383 = vpack.c.b16 %v338, %v337
        %v384 = vpack.c.b16 %v340, %v339
        %v385 = vpack.c.b16 %v342, %v341
        %v386 = vpack.c.b16 %v344, %v343
        %v387 = vpack.c.b16 %v346, %v345
        %v388 = vpack.c.b16 %v348, %v347
        %v389 = vpack.c.b16 %v350, %v349
        %v390 = vpack.c.b16 %v352, %v351
        %v391 = vpack.c.b16 %v354, %v353
        %v392 = vpack.c.b16 %v356, %v355
        %v393 = vpack.c.b16 %v358, %v357
        %v394 = vpack.c.b16 %v360, %v359
        %v395 = vpack.c.b16 %v362, %v361
        %v396 = vpack.c.b16 %v364, %v363
        %v397 = vpack.c.b16 %v366, %v365
        %v398 = vpack.c.b16 %v368, %v367
        %v399 = vpack.c.b16 %v370, %v369
        %v400 = vpack.c.b16 %v372, %v371
        %v401 = vpack.c.b16 %v374, %v373
        %v402 = vpack.c.b16 %v375, %v375
        %v411 = vunpack.c.l.b16 %v209
        %v412 = vunpack.c.h.b16 %v209
        %v413 = vunpack.c.l.b16 %v210
        %v414 = vunpack.c.h.b16 %v210
        %v415 = vunpack.c.l.b16 %v211
        %v416 = vunpack.c.h.b16 %v211
        %v417 = vunpack.c.l.b16 %v212
        %v418 = vunpack.c.h.b16 %v212
        %v419 = vunpack.c.l.b16 %v213
        %v420 = vunpack.c.h.b16 %v213
        %v421 = vunpack.c.l.b16 %v214
        %v422 = vunpack.c.h.b16 %v214
        %v423 = vunpack.c.l.b16 %v215
        %v424 = vunpack.c.h.b16 %v215
        %v425 = vunpack.c.l.b16 %v216
        %v426 = vunpack.c.h.b16 %v216
        %v427 = vpack.c.b16 %v413, %v411
        %v428 = vpack.c.b16 %v414, %v412
        %v429 = vpack.c.b16 %v417, %v415
        %v430 = vpack.c.b16 %v418, %v416
        %v431 = vpack.c.b16 %v421, %v419
        %v432 = vpack.c.b16 %v422, %v420
        %v433 = vpack.c.b16 %v425, %v423
        %v434 = vpack.c.b16 %v426, %v424
        %vm443 = vcmask 523264
        %v445 = vsel %vm443, %v376, 0
        %v448 = vsel %vm443, %v377, 0
        %v451 = vsel %vm443, %v378, 0
        %v454 = vsel %vm443, %v379, 0
        %v457 = vsel %vm443, %v380, 0
        %v460 = vsel %vm443, %v381, 0
        %v463 = vsel %vm443, %v382, 0
        %v466 = vsel %vm443, %v383, 0
        %v469 = vsel %vm443, %v384, 0
        %v472 = vsel %vm443, %v385, 0
        %v475 = vsel %vm443, %v386, 0
        %v478 = vsel %vm443, %v387, 0
        %v481 = vsel %vm443, %v388, 0
        %v484 = vsel %vm443, %v389, 0
        %v487 = vsel %vm443, %v390, 0
        %v490 = vsel %vm443, %v391, 0
        %v493 = vsel %vm443, %v392, 0
        %v496 = vsel %vm443, %v393, 0
        %v499 = vsel %vm443, %v394, 0
        %v502 = vsel %vm443, %v395, 0
        %v505 = vsel %vm443, %v396, 0
        %v508 = vsel %vm443, %v397, 0
        %v511 = vsel %vm443, %v398, 0
        %v514 = vsel %vm443, %v399, 0
        %v517 = vsel %vm443, %v400, 0
        %v520 = vsel %vm443, %v401, 0
        %v523 = vsel %vm443, %v402, 0
        %525 = vmatprep.subr.bf16.mxu0 0
        %526 = vmatpush1.bf16.msra.mxu0 0
        %527 = vmatprep.subr.bf16.mxu0 0
        %528 = vmatpush1.bf16.msra.mxu0 0
        %529 = vmatprep.subr.bf16.mxu0 0
        %530 = vmatpush1.bf16.msra.mxu0 0
        %531 = vmatprep.subr.bf16.mxu0 0
        %532 = vmatpush1.bf16.msra.mxu0 0
        %533 = vmatprep.subr.bf16.mxu0 %v434
        %534 = vmatpush1.bf16.msra.mxu0 %v433
        %535 = vmatprep.subr.bf16.mxu0 %v432
        %536 = vmatpush1.bf16.msra.mxu0 %v431
        %537 = vmatprep.subr.bf16.mxu0 %v430
        %538 = vmatpush1.bf16.msra.mxu0 %v429
        %539 = vmatprep.subr.bf16.mxu0 %v428
        %540 = vmatpush1.bf16.msra.mxu0 %v427
        %541 = vmatprep.subr.bf16.mxu0 0
        %542 = vmatpush2.bf16.msra.mxu0 0
        %543 = vmatprep.subr.bf16.mxu0 0
        %544 = vmatpush2.bf16.msra.mxu0 0
        %545 = vmatprep.subr.bf16.mxu0 0
        %546 = vmatpush2.bf16.msra.mxu0 0
        %547 = vmatprep.subr.bf16.mxu0 0
        %548 = vmatpush2.bf16.msra.mxu0 0
        %549 = vmatprep.subr.bf16.mxu0 0
        %550 = vmatpush2.bf16.msra.mxu0 0
        %551 = vmatprep.subr.bf16.mxu0 0
        %552 = vmatpush2.bf16.msra.mxu0 0
        %553 = vmatprep.subr.bf16.mxu0 0
        %554 = vmatpush2.bf16.msra.mxu0 0
        %555 = vmatprep.subr.bf16.mxu0 0
        %556 = vmatpush2.bf16.msra.mxu0 0
        %557 = vmatprep.mubr.bf16.mxu0 0
        %558 = vmatmul.mubr.bf16.gmra.mxu0 %v445
        %v559 = vpop.f32.mrf.mxu0
        %v560 = vadd.f32 0.0, %v559
        %v561 = vpop.f32.mrf.mxu0
        %v562 = vadd.f32 0.0, %v561
        %v563 = vpop.f32.mrf.mxu0
        %v564 = vadd.f32 0.0, %v563
        %v565 = vpop.f32.mrf.mxu0
        %v566 = vadd.f32 0.0, %v565
        %567 = vmatprep.mubr.bf16.mxu0 0
        %568 = vmatmul.mubr.bf16.gmra.mxu0 %v448
        %v569 = vpop.f32.mrf.mxu0
        %v570 = vadd.f32 0.0, %v569
        %v571 = vpop.f32.mrf.mxu0
        %v572 = vadd.f32 0.0, %v571
        %v573 = vpop.f32.mrf.mxu0
        %v574 = vadd.f32 0.0, %v573
        %v575 = vpop.f32.mrf.mxu0
        %v576 = vadd.f32 0.0, %v575
        %577 = vmatprep.mubr.bf16.mxu0 0
        %578 = vmatmul.mubr.bf16.gmra.mxu0 %v451
        %v579 = vpop.f32.mrf.mxu0
        %v580 = vadd.f32 0.0, %v579
        %v581 = vpop.f32.mrf.mxu0
        %v582 = vadd.f32 0.0, %v581
        %v583 = vpop.f32.mrf.mxu0
        %v584 = vadd.f32 0.0, %v583
        %v585 = vpop.f32.mrf.mxu0
        %v586 = vadd.f32 0.0, %v585
        %587 = vmatprep.mubr.bf16.mxu0 0
        %588 = vmatmul.mubr.bf16.gmra.mxu0 %v454
        %v589 = vpop.f32.mrf.mxu0
        %v590 = vadd.f32 0.0, %v589
        %v591 = vpop.f32.mrf.mxu0
        %v592 = vadd.f32 0.0, %v591
        %v593 = vpop.f32.mrf.mxu0
        %v594 = vadd.f32 0.0, %v593
        %v595 = vpop.f32.mrf.mxu0
        %v596 = vadd.f32 0.0, %v595
        %597 = vmatprep.mubr.bf16.mxu0 0
        %598 = vmatmul.mubr.bf16.gmra.mxu0 %v457
        %v599 = vpop.f32.mrf.mxu0
        %v600 = vadd.f32 0.0, %v599
        %v601 = vpop.f32.mrf.mxu0
        %v602 = vadd.f32 0.0, %v601
        %v603 = vpop.f32.mrf.mxu0
        %v604 = vadd.f32 0.0, %v603
        %v605 = vpop.f32.mrf.mxu0
        %v606 = vadd.f32 0.0, %v605
        %607 = vmatprep.mubr.bf16.mxu0 0
        %608 = vmatmul.mubr.bf16.gmra.mxu0 %v460
        %v609 = vpop.f32.mrf.mxu0
        %v610 = vadd.f32 0.0, %v609
        %v611 = vpop.f32.mrf.mxu0
        %v612 = vadd.f32 0.0, %v611
        %v613 = vpop.f32.mrf.mxu0
        %v614 = vadd.f32 0.0, %v613
        %v615 = vpop.f32.mrf.mxu0
        %v616 = vadd.f32 0.0, %v615
        %617 = vmatprep.mubr.bf16.mxu0 0
        %618 = vmatmul.mubr.bf16.gmra.mxu0 %v463
        %v619 = vpop.f32.mrf.mxu0
        %v620 = vadd.f32 0.0, %v619
        %v621 = vpop.f32.mrf.mxu0
        %v622 = vadd.f32 0.0, %v621
        %v623 = vpop.f32.mrf.mxu0
        %v624 = vadd.f32 0.0, %v623
        %v625 = vpop.f32.mrf.mxu0
        %v626 = vadd.f32 0.0, %v625
        %627 = vmatprep.mubr.bf16.mxu0 0
        %628 = vmatmul.mubr.bf16.gmra.mxu0 %v466
        %v629 = vpop.f32.mrf.mxu0
        %v630 = vadd.f32 0.0, %v629
        %v631 = vpop.f32.mrf.mxu0
        %v632 = vadd.f32 0.0, %v631
        %v633 = vpop.f32.mrf.mxu0
        %v634 = vadd.f32 0.0, %v633
        %v635 = vpop.f32.mrf.mxu0
        %v636 = vadd.f32 0.0, %v635
        %637 = vmatprep.mubr.bf16.mxu0 0
        %638 = vmatmul.mubr.bf16.gmra.mxu0 %v469
        %v639 = vpop.f32.mrf.mxu0
        %v640 = vadd.f32 0.0, %v639
        %v641 = vpop.f32.mrf.mxu0
        %v642 = vadd.f32 0.0, %v641
        %v643 = vpop.f32.mrf.mxu0
        %v644 = vadd.f32 0.0, %v643
        %v645 = vpop.f32.mrf.mxu0
        %v646 = vadd.f32 0.0, %v645
        %647 = vmatprep.mubr.bf16.mxu0 0
        %648 = vmatmul.mubr.bf16.gmra.mxu0 %v472
        %v649 = vpop.f32.mrf.mxu0
        %v650 = vadd.f32 0.0, %v649
        %v651 = vpop.f32.mrf.mxu0
        %v652 = vadd.f32 0.0, %v651
        %v653 = vpop.f32.mrf.mxu0
        %v654 = vadd.f32 0.0, %v653
        %v655 = vpop.f32.mrf.mxu0
        %v656 = vadd.f32 0.0, %v655
        %657 = vmatprep.mubr.bf16.mxu0 0
        %658 = vmatmul.mubr.bf16.gmra.mxu0 %v475
        %v659 = vpop.f32.mrf.mxu0
        %v660 = vadd.f32 0.0, %v659
        %v661 = vpop.f32.mrf.mxu0
        %v662 = vadd.f32 0.0, %v661
        %v663 = vpop.f32.mrf.mxu0
        %v664 = vadd.f32 0.0, %v663
        %v665 = vpop.f32.mrf.mxu0
        %v666 = vadd.f32 0.0, %v665
        %667 = vmatprep.mubr.bf16.mxu0 0
        %668 = vmatmul.mubr.bf16.gmra.mxu0 %v478
        %v669 = vpop.f32.mrf.mxu0
        %v670 = vadd.f32 0.0, %v669
        %v671 = vpop.f32.mrf.mxu0
        %v672 = vadd.f32 0.0, %v671
        %v673 = vpop.f32.mrf.mxu0
        %v674 = vadd.f32 0.0, %v673
        %v675 = vpop.f32.mrf.mxu0
        %v676 = vadd.f32 0.0, %v675
        %677 = vmatprep.mubr.bf16.mxu0 0
        %678 = vmatmul.mubr.bf16.gmra.mxu0 %v481
        %v679 = vpop.f32.mrf.mxu0
        %v680 = vadd.f32 0.0, %v679
        %v681 = vpop.f32.mrf.mxu0
        %v682 = vadd.f32 0.0, %v681
        %v683 = vpop.f32.mrf.mxu0
        %v684 = vadd.f32 0.0, %v683
        %v685 = vpop.f32.mrf.mxu0
        %v686 = vadd.f32 0.0, %v685
        %687 = vmatprep.mubr.bf16.mxu0 0
        %688 = vmatmul.mubr.bf16.gmra.mxu0 %v484
        %v689 = vpop.f32.mrf.mxu0
        %v690 = vadd.f32 0.0, %v689
        %v691 = vpop.f32.mrf.mxu0
        %v692 = vadd.f32 0.0, %v691
        %v693 = vpop.f32.mrf.mxu0
        %v694 = vadd.f32 0.0, %v693
        %v695 = vpop.f32.mrf.mxu0
        %v696 = vadd.f32 0.0, %v695
        %697 = vmatprep.mubr.bf16.mxu0 0
        %698 = vmatmul.mubr.bf16.gmra.mxu0 %v487
        %v699 = vpop.f32.mrf.mxu0
        %v700 = vadd.f32 0.0, %v699
        %v701 = vpop.f32.mrf.mxu0
        %v702 = vadd.f32 0.0, %v701
        %v703 = vpop.f32.mrf.mxu0
        %v704 = vadd.f32 0.0, %v703
        %v705 = vpop.f32.mrf.mxu0
        %v706 = vadd.f32 0.0, %v705
        %707 = vmatprep.mubr.bf16.mxu0 0
        %708 = vmatmul.mubr.bf16.gmra.mxu0 %v490
        %v709 = vpop.f32.mrf.mxu0
        %v710 = vadd.f32 0.0, %v709
        %v711 = vpop.f32.mrf.mxu0
        %v712 = vadd.f32 0.0, %v711
        %v713 = vpop.f32.mrf.mxu0
        %v714 = vadd.f32 0.0, %v713
        %v715 = vpop.f32.mrf.mxu0
        %v716 = vadd.f32 0.0, %v715
        %717 = vmatprep.mubr.bf16.mxu0 0
        %718 = vmatmul.mubr.bf16.gmra.mxu0 %v493
        %v719 = vpop.f32.mrf.mxu0
        %v720 = vadd.f32 0.0, %v719
        %v721 = vpop.f32.mrf.mxu0
        %v722 = vadd.f32 0.0, %v721
        %v723 = vpop.f32.mrf.mxu0
        %v724 = vadd.f32 0.0, %v723
        %v725 = vpop.f32.mrf.mxu0
        %v726 = vadd.f32 0.0, %v725
        %727 = vmatprep.mubr.bf16.mxu0 0
        %728 = vmatmul.mubr.bf16.gmra.mxu0 %v496
        %v729 = vpop.f32.mrf.mxu0
        %v730 = vadd.f32 0.0, %v729
        %v731 = vpop.f32.mrf.mxu0
        %v732 = vadd.f32 0.0, %v731
        %v733 = vpop.f32.mrf.mxu0
        %v734 = vadd.f32 0.0, %v733
        %v735 = vpop.f32.mrf.mxu0
        %v736 = vadd.f32 0.0, %v735
        %737 = vmatprep.mubr.bf16.mxu0 0
        %738 = vmatmul.mubr.bf16.gmra.mxu0 %v499
        %v739 = vpop.f32.mrf.mxu0
        %v740 = vadd.f32 0.0, %v739
        %v741 = vpop.f32.mrf.mxu0
        %v742 = vadd.f32 0.0, %v741
        %v743 = vpop.f32.mrf.mxu0
        %v744 = vadd.f32 0.0, %v743
        %v745 = vpop.f32.mrf.mxu0
        %v746 = vadd.f32 0.0, %v745
        %747 = vmatprep.mubr.bf16.mxu0 0
        %748 = vmatmul.mubr.bf16.gmra.mxu0 %v502
        %v749 = vpop.f32.mrf.mxu0
        %v750 = vadd.f32 0.0, %v749
        %v751 = vpop.f32.mrf.mxu0
        %v752 = vadd.f32 0.0, %v751
        %v753 = vpop.f32.mrf.mxu0
        %v754 = vadd.f32 0.0, %v753
        %v755 = vpop.f32.mrf.mxu0
        %v756 = vadd.f32 0.0, %v755
        %757 = vmatprep.mubr.bf16.mxu0 0
        %758 = vmatmul.mubr.bf16.gmra.mxu0 %v505
        %v759 = vpop.f32.mrf.mxu0
        %v760 = vadd.f32 0.0, %v759
        %v761 = vpop.f32.mrf.mxu0
        %v762 = vadd.f32 0.0, %v761
        %v763 = vpop.f32.mrf.mxu0
        %v764 = vadd.f32 0.0, %v763
        %v765 = vpop.f32.mrf.mxu0
        %v766 = vadd.f32 0.0, %v765
        %767 = vmatprep.mubr.bf16.mxu0 0
        %768 = vmatmul.mubr.bf16.gmra.mxu0 %v508
        %v769 = vpop.f32.mrf.mxu0
        %v770 = vadd.f32 0.0, %v769
        %v771 = vpop.f32.mrf.mxu0
        %v772 = vadd.f32 0.0, %v771
        %v773 = vpop.f32.mrf.mxu0
        %v774 = vadd.f32 0.0, %v773
        %v775 = vpop.f32.mrf.mxu0
        %v776 = vadd.f32 0.0, %v775
        %777 = vmatprep.mubr.bf16.mxu0 0
        %778 = vmatmul.mubr.bf16.gmra.mxu0 %v511
        %v779 = vpop.f32.mrf.mxu0
        %v780 = vadd.f32 0.0, %v779
        %v781 = vpop.f32.mrf.mxu0
        %v782 = vadd.f32 0.0, %v781
        %v783 = vpop.f32.mrf.mxu0
        %v784 = vadd.f32 0.0, %v783
        %v785 = vpop.f32.mrf.mxu0
        %v786 = vadd.f32 0.0, %v785
        %787 = vmatprep.mubr.bf16.mxu0 0
        %788 = vmatmul.mubr.bf16.gmra.mxu0 %v514
        %v789 = vpop.f32.mrf.mxu0
        %v790 = vadd.f32 0.0, %v789
        %v791 = vpop.f32.mrf.mxu0
        %v792 = vadd.f32 0.0, %v791
        %v793 = vpop.f32.mrf.mxu0
        %v794 = vadd.f32 0.0, %v793
        %v795 = vpop.f32.mrf.mxu0
        %v796 = vadd.f32 0.0, %v795
        %797 = vmatprep.mubr.bf16.mxu0 0
        %798 = vmatmul.mubr.bf16.gmra.mxu0 %v517
        %v799 = vpop.f32.mrf.mxu0
        %v800 = vadd.f32 0.0, %v799
        %v801 = vpop.f32.mrf.mxu0
        %v802 = vadd.f32 0.0, %v801
        %v803 = vpop.f32.mrf.mxu0
        %v804 = vadd.f32 0.0, %v803
        %v805 = vpop.f32.mrf.mxu0
        %v806 = vadd.f32 0.0, %v805
        %807 = vmatprep.mubr.bf16.mxu0 0
        %808 = vmatmul.mubr.bf16.gmra.mxu0 %v520
        %v809 = vpop.f32.mrf.mxu0
        %v810 = vadd.f32 0.0, %v809
        %v811 = vpop.f32.mrf.mxu0
        %v812 = vadd.f32 0.0, %v811
        %v813 = vpop.f32.mrf.mxu0
        %v814 = vadd.f32 0.0, %v813
        %v815 = vpop.f32.mrf.mxu0
        %v816 = vadd.f32 0.0, %v815
        %817 = vmatprep.mubr.bf16.mxu0 0
        %818 = vmatmul.mubr.bf16.gmra.mxu0 %v523
        %v819 = vpop.f32.mrf.mxu0
        %v820 = vadd.f32 0.0, %v819
        %v821 = vpop.f32.mrf.mxu0
        %v822 = vadd.f32 0.0, %v821
        %v823 = vpop.f32.mrf.mxu0
        %v824 = vpop.f32.mrf.mxu0
        %825 = vdwg.mxu0
        %v826 = vld [vmem:[%s1 + $0xf4] sm:$0xf]
        %v827 = vld [vmem:[%s1 + $0xf8] sm:$0xf]
        %v828 = vld [vmem:[%s1 + $0xfc] sm:$0xf]
        %v829 = vld [vmem:[%s1 + $0x100] sm:$0xf]
        %v830 = vld [vmem:[%s1 + $0x104] sm:$0xf]
        %v831 = vld [vmem:[%s1 + $0x108] sm:$0xf]
        %v832 = vld [vmem:[%s1 + $0x10c] sm:$0xf]
        %v833 = vld [vmem:[%s1 + $0x110] sm:$0xf]
        %v834 = vunpack.c.l.bf16 %v826
        %v835 = vunpack.c.l.bf16 %v827
        %v836 = vunpack.c.l.bf16 %v828
        %v837 = vunpack.c.l.bf16 %v829
        %v838 = vunpack.c.l.bf16 %v830
        %v839 = vunpack.c.l.bf16 %v831
        %v840 = vunpack.c.l.bf16 %v832
        %v841 = vunpack.c.l.bf16 %v833
        %v842 = vmax.f32 %v560, 0.0
        %v843 = vmax.f32 %v562, 0.0
        %v844 = vmax.f32 %v564, 0.0
        %v845 = vmax.f32 %v566, 0.0
        %v846 = vmax.f32 %v570, 0.0
        %v847 = vmax.f32 %v572, 0.0
        %v848 = vmax.f32 %v574, 0.0
        %v849 = vmax.f32 %v576, 0.0
        %v850 = vmax.f32 %v580, 0.0
        %v851 = vmax.f32 %v582, 0.0
        %v852 = vmax.f32 %v584, 0.0
        %v853 = vmax.f32 %v586, 0.0
        %v854 = vmax.f32 %v590, 0.0
        %v855 = vmax.f32 %v592, 0.0
        %v856 = vmax.f32 %v594, 0.0
        %v857 = vmax.f32 %v596, 0.0
        %v858 = vld [vmem:[%s1 + $0xd4] sm:$0xf]
        %v859 = vld [vmem:[%s1 + $0xd8] sm:$0xf]
        %v860 = vld [vmem:[%s1 + $0xdc] sm:$0xf]
        %v861 = vld [vmem:[%s1 + $0xe0] sm:$0xf]
        %v862 = vld [vmem:[%s1 + $0xe4] sm:$0xf]
        %v863 = vld [vmem:[%s1 + $0xe8] sm:$0xf]
        %v864 = vld [vmem:[%s1 + $0xec] sm:$0xf]
        %v865 = vld [vmem:[%s1 + $0xf0] sm:$0xf]
        %v866 = vpack.c.bf16 %v844, %v842
        %v867 = vpack.c.bf16 %v845, %v843
        %v868 = vpack.c.bf16 %v848, %v846
        %v869 = vpack.c.bf16 %v849, %v847
        %v870 = vpack.c.bf16 %v852, %v850
        %v871 = vpack.c.bf16 %v853, %v851
        %v872 = vpack.c.bf16 %v856, %v854
        %v873 = vpack.c.bf16 %v857, %v855
        %v882 = vunpack.c.l.b16 %v858
        %v883 = vunpack.c.l.b16 %v859
        %v884 = vunpack.c.l.b16 %v860
        %v885 = vunpack.c.l.b16 %v861
        %v886 = vunpack.c.l.b16 %v862
        %v887 = vunpack.c.l.b16 %v863
        %v888 = vunpack.c.l.b16 %v864
        %v889 = vunpack.c.l.b16 %v865
        %v890 = vpack.c.b16 %v883, %v882
        %v891 = vpack.c.b16 %v885, %v884
        %v892 = vpack.c.b16 %v887, %v886
        %v893 = vpack.c.b16 %v889, %v888
        %v895 = vsel %vm443, %v890, 0
        %v898 = vsel %vm443, %v891, 0
        %v901 = vsel %vm443, %v892, 0
        %v904 = vsel %vm443, %v893, 0
        %906 = vmatprep.subr.bf16.mxu0 0
        %907 = vmatpush1.bf16.msra.mxu0 0
        %908 = vmatprep.subr.bf16.mxu0 0
        %909 = vmatpush1.bf16.msra.mxu0 0
        %910 = vmatprep.subr.bf16.mxu0 0
        %911 = vmatpush1.bf16.msra.mxu0 0
        %912 = vmatprep.subr.bf16.mxu0 0
        %913 = vmatpush1.bf16.msra.mxu0 0
        %914 = vmatprep.subr.bf16.mxu0 %v873
        %915 = vmatpush1.bf16.msra.mxu0 %v872
        %916 = vmatprep.subr.bf16.mxu0 %v871
        %917 = vmatpush1.bf16.msra.mxu0 %v870
        %918 = vmatprep.subr.bf16.mxu0 %v869
        %919 = vmatpush1.bf16.msra.mxu0 %v868
        %920 = vmatprep.subr.bf16.mxu0 %v867
        %921 = vmatpush1.bf16.msra.mxu0 %v866
        %922 = vmatprep.subr.bf16.mxu0 0
        %923 = vmatpush2.bf16.msra.mxu0 0
        %924 = vmatprep.subr.bf16.mxu0 0
        %925 = vmatpush2.bf16.msra.mxu0 0
        %926 = vmatprep.subr.bf16.mxu0 0
        %927 = vmatpush2.bf16.msra.mxu0 0
        %928 = vmatprep.subr.bf16.mxu0 0
        %929 = vmatpush2.bf16.msra.mxu0 0
        %930 = vmatprep.subr.bf16.mxu0 0
        %931 = vmatpush2.bf16.msra.mxu0 0
        %932 = vmatprep.subr.bf16.mxu0 0
        %933 = vmatpush2.bf16.msra.mxu0 0
        %934 = vmatprep.subr.bf16.mxu0 0
        %935 = vmatpush2.bf16.msra.mxu0 0
        %936 = vmatprep.subr.bf16.mxu0 0
        %937 = vmatpush2.bf16.msra.mxu0 0
        %938 = vmatprep.mubr.bf16.mxu0 0
        %939 = vmatmul.mubr.bf16.gmra.mxu0 %v895
        %v940 = vpop.f32.mrf.mxu0
        %v941 = vadd.f32 0.0, %v940
        %v942 = vpop.f32.mrf.mxu0
        %v943 = vadd.f32 0.0, %v942
        %v944 = vpop.f32.mrf.mxu0
        %v945 = vadd.f32 0.0, %v944
        %v946 = vpop.f32.mrf.mxu0
        %v947 = vadd.f32 0.0, %v946
        %948 = vmatprep.mubr.bf16.mxu0 0
        %949 = vmatmul.mubr.bf16.gmra.mxu0 %v898
        %v950 = vpop.f32.mrf.mxu0
        %v951 = vadd.f32 0.0, %v950
        %v952 = vpop.f32.mrf.mxu0
        %v953 = vadd.f32 0.0, %v952
        %v954 = vpop.f32.mrf.mxu0
        %v955 = vadd.f32 0.0, %v954
        %v956 = vpop.f32.mrf.mxu0
        %v957 = vadd.f32 0.0, %v956
        %958 = vmatprep.mubr.bf16.mxu0 0
        %959 = vmatmul.mubr.bf16.gmra.mxu0 %v901
        %v960 = vpop.f32.mrf.mxu0
        %v961 = vadd.f32 0.0, %v960
        %v962 = vpop.f32.mrf.mxu0
        %v963 = vadd.f32 0.0, %v962
        %v964 = vpop.f32.mrf.mxu0
        %v965 = vadd.f32 0.0, %v964
        %v966 = vpop.f32.mrf.mxu0
        %v967 = vadd.f32 0.0, %v966
        %968 = vmatprep.mubr.bf16.mxu0 0
        %969 = vmatmul.mubr.bf16.gmra.mxu0 %v904
        %v970 = vpop.f32.mrf.mxu0
        %v971 = vadd.f32 0.0, %v970
        %v972 = vpop.f32.mrf.mxu0
        %v973 = vadd.f32 0.0, %v972
        %v974 = vpop.f32.mrf.mxu0
        %v975 = vadd.f32 0.0, %v974
        %v976 = vpop.f32.mrf.mxu0
        %v977 = vadd.f32 0.0, %v976
        %978 = vdwg.mxu0
        %v979 = vmax.f32 %v941, 0.0
        %v980 = vmax.f32 %v943, 0.0
        %v981 = vmax.f32 %v945, 0.0
        %v982 = vmax.f32 %v947, 0.0
        %v983 = vmax.f32 %v951, 0.0
        %v984 = vmax.f32 %v953, 0.0
        %v985 = vmax.f32 %v955, 0.0
        %v986 = vmax.f32 %v957, 0.0
        %v987 = vmax.f32 %v961, 0.0
        %v988 = vmax.f32 %v963, 0.0
        %v989 = vmax.f32 %v965, 0.0
        %v990 = vmax.f32 %v967, 0.0
        %v991 = vmax.f32 %v971, 0.0
        %v992 = vmax.f32 %v973, 0.0
        %v993 = vmax.f32 %v975, 0.0
        %v994 = vmax.f32 %v977, 0.0
        %996 = vset.pattern.permute.xlu0 0
        %997 = vperm.xlu0 %996, %v834
        %v998 = vpop.permute.xlu0 %997
        %1001 = vset.pattern.permute.xlu0 0
        %1002 = vperm.xlu0 %1001, %v835
        %v1003 = vpop.permute.xlu0 %1002
        %1006 = vset.pattern.permute.xlu0 0
        %1007 = vperm.xlu0 %1006, %v836
        %v1008 = vpop.permute.xlu0 %1007
        %1011 = vset.pattern.permute.xlu0 0
        %1012 = vperm.xlu0 %1011, %v837
        %v1013 = vpop.permute.xlu0 %1012
        %1016 = vset.pattern.permute.xlu0 0
        %1017 = vperm.xlu0 %1016, %v838
        %v1018 = vpop.permute.xlu0 %1017
        %1021 = vset.pattern.permute.xlu0 0
        %1022 = vperm.xlu0 %1021, %v839
        %v1023 = vpop.permute.xlu0 %1022
        %1026 = vset.pattern.permute.xlu0 0
        %1027 = vperm.xlu0 %1026, %v840
        %v1028 = vpop.permute.xlu0 %1027
        %1031 = vset.pattern.permute.xlu0 0
        %1032 = vperm.xlu0 %1031, %v841
        %v1033 = vpop.permute.xlu0 %1032
        %v1035 = vmul.f32 %v998, %v979
        %v1036 = vmul.f32 %v998, %v980
        %v1037 = vmul.f32 %v1003, %v981
        %v1038 = vmul.f32 %v1003, %v982
        %v1039 = vmul.f32 %v1008, %v983
        %v1040 = vmul.f32 %v1008, %v984
        %v1041 = vmul.f32 %v1013, %v985
        %v1042 = vmul.f32 %v1013, %v986
        %v1043 = vmul.f32 %v1018, %v987
        %v1044 = vmul.f32 %v1018, %v988
        %v1045 = vmul.f32 %v1023, %v989
        %v1046 = vmul.f32 %v1023, %v990
        %v1047 = vmul.f32 %v1028, %v991
        %v1048 = vmul.f32 %v1028, %v992
        %v1049 = vmul.f32 %v1033, %v993
        %v1050 = vmul.f32 %v1033, %v994
        %v1051 = vadd.f32 %v1035, %v1037
        %v1052 = vadd.f32 %v1051, %v1039
        %v1053 = vadd.f32 %v1052, %v1041
        %v1054 = vadd.f32 %v1053, %v1043
        %v1055 = vadd.f32 %v1054, %v1045
        %v1056 = vadd.f32 %v1055, %v1047
        %v1057 = vadd.f32 %v1056, %v1049
        %v1058 = vrot.slane %v1057, 4
        %v1059 = vadd.f32 %v1057, %v1058
        %v1060 = vrot.slane %v1059, 2
        %v1061 = vadd.f32 %v1059, %v1060
        %v1062 = vrot.slane %v1061, 1
        %v1063 = vadd.f32 %v1061, %v1062
        %v1064 = vadd.f32 %v1036, %v1038
        %v1065 = vadd.f32 %v1064, %v1040
        %v1066 = vadd.f32 %v1065, %v1042
        %v1067 = vadd.f32 %v1066, %v1044
        %v1068 = vadd.f32 %v1067, %v1046
        %v1069 = vadd.f32 %v1068, %v1048
        %v1070 = vadd.f32 %v1069, %v1050
        %v1071 = vrot.slane %v1070, 4
        %v1072 = vadd.f32 %v1070, %v1071
        %v1073 = vrot.slane %v1072, 2
        %v1074 = vadd.f32 %v1072, %v1073
        %v1075 = vrot.slane %v1074, 1
        %v1076 = vadd.f32 %v1074, %v1075
        %v1077 = vunpack.c.l.bf16 %v209
        %v1078 = vunpack.c.h.bf16 %v209
        %v1079 = vunpack.c.l.bf16 %v210
        %v1080 = vunpack.c.h.bf16 %v210
        %v1081 = vunpack.c.l.bf16 %v211
        %v1082 = vunpack.c.h.bf16 %v211
        %v1083 = vunpack.c.l.bf16 %v212
        %v1084 = vunpack.c.h.bf16 %v212
        %v1085 = vunpack.c.l.bf16 %v213
        %v1086 = vunpack.c.h.bf16 %v213
        %v1087 = vunpack.c.l.bf16 %v214
        %v1088 = vunpack.c.h.bf16 %v214
        %v1089 = vunpack.c.l.bf16 %v215
        %v1090 = vunpack.c.h.bf16 %v215
        %v1091 = vmul.f32 %v600, %v1077
        %v1092 = vmul.f32 %v602, %v1078
        %v1093 = vmul.f32 %v634, %v1077
        %v1094 = vmul.f32 %v636, %v1078
        %v1095 = vmul.f32 %v670, %v1077
        %v1096 = vmul.f32 %v672, %v1078
        %v1097 = vmul.f32 %v704, %v1077
        %v1098 = vmul.f32 %v706, %v1078
        %v1099 = vmul.f32 %v604, %v1079
        %v1100 = vmul.f32 %v606, %v1080
        %v1101 = vmul.f32 %v640, %v1079
        %v1102 = vmul.f32 %v642, %v1080
        %v1103 = vmul.f32 %v674, %v1079
        %v1104 = vmul.f32 %v676, %v1080
        %v1105 = vmul.f32 %v710, %v1079
        %v1106 = vmul.f32 %v712, %v1080
        %v1107 = vadd.f32 %v1091, %v1099
        %v1108 = vadd.f32 %v1092, %v1100
        %v1109 = vadd.f32 %v1093, %v1101
        %v1110 = vadd.f32 %v1094, %v1102
        %v1111 = vadd.f32 %v1095, %v1103
        %v1112 = vadd.f32 %v1096, %v1104
        %v1113 = vadd.f32 %v1097, %v1105
        %v1114 = vadd.f32 %v1098, %v1106
        %v1115 = vmul.f32 %v610, %v1081
        %v1116 = vmul.f32 %v612, %v1082
        %v1117 = vmul.f32 %v644, %v1081
        %v1118 = vmul.f32 %v646, %v1082
        %v1119 = vmul.f32 %v680, %v1081
        %v1120 = vmul.f32 %v682, %v1082
        %v1121 = vmul.f32 %v714, %v1081
        %v1122 = vmul.f32 %v716, %v1082
        %v1123 = vadd.f32 %v1107, %v1115
        %v1124 = vadd.f32 %v1108, %v1116
        %v1125 = vadd.f32 %v1109, %v1117
        %v1126 = vadd.f32 %v1110, %v1118
        %v1127 = vadd.f32 %v1111, %v1119
        %v1128 = vadd.f32 %v1112, %v1120
        %v1129 = vadd.f32 %v1113, %v1121
        %v1130 = vadd.f32 %v1114, %v1122
        %v1131 = vmul.f32 %v614, %v1083
        %v1132 = vmul.f32 %v616, %v1084
        %v1133 = vmul.f32 %v650, %v1083
        %v1134 = vmul.f32 %v652, %v1084
        %v1135 = vmul.f32 %v684, %v1083
        %v1136 = vmul.f32 %v686, %v1084
        %v1137 = vmul.f32 %v720, %v1083
        %v1138 = vmul.f32 %v722, %v1084
        %v1139 = vadd.f32 %v1123, %v1131
        %v1140 = vadd.f32 %v1124, %v1132
        %v1141 = vadd.f32 %v1125, %v1133
        %v1142 = vadd.f32 %v1126, %v1134
        %v1143 = vadd.f32 %v1127, %v1135
        %v1144 = vadd.f32 %v1128, %v1136
        %v1145 = vadd.f32 %v1129, %v1137
        %v1146 = vadd.f32 %v1130, %v1138
        %v1147 = vmul.f32 %v620, %v1085
        %v1148 = vmul.f32 %v622, %v1086
        %v1149 = vmul.f32 %v654, %v1085
        %v1150 = vmul.f32 %v656, %v1086
        %v1151 = vmul.f32 %v690, %v1085
        %v1152 = vmul.f32 %v692, %v1086
        %v1153 = vmul.f32 %v724, %v1085
        %v1154 = vmul.f32 %v726, %v1086
        %v1155 = vadd.f32 %v1139, %v1147
        %v1156 = vadd.f32 %v1140, %v1148
        %v1157 = vadd.f32 %v1141, %v1149
        %v1158 = vadd.f32 %v1142, %v1150
        %v1159 = vadd.f32 %v1143, %v1151
        %v1160 = vadd.f32 %v1144, %v1152
        %v1161 = vadd.f32 %v1145, %v1153
        %v1162 = vadd.f32 %v1146, %v1154
        %v1163 = vmul.f32 %v624, %v1087
        %v1164 = vmul.f32 %v626, %v1088
        %v1165 = vmul.f32 %v660, %v1087
        %v1166 = vmul.f32 %v662, %v1088
        %v1167 = vmul.f32 %v694, %v1087
        %v1168 = vmul.f32 %v696, %v1088
        %v1169 = vmul.f32 %v730, %v1087
        %v1170 = vmul.f32 %v732, %v1088
        %v1171 = vadd.f32 %v1155, %v1163
        %v1172 = vadd.f32 %v1156, %v1164
        %v1173 = vadd.f32 %v1157, %v1165
        %v1174 = vadd.f32 %v1158, %v1166
        %v1175 = vadd.f32 %v1159, %v1167
        %v1176 = vadd.f32 %v1160, %v1168
        %v1177 = vadd.f32 %v1161, %v1169
        %v1178 = vadd.f32 %v1162, %v1170
        %v1179 = vmul.f32 %v630, %v1089
        %v1180 = vmul.f32 %v632, %v1090
        %v1181 = vmul.f32 %v664, %v1089
        %v1182 = vmul.f32 %v666, %v1090
        %v1183 = vmul.f32 %v700, %v1089
        %v1184 = vmul.f32 %v702, %v1090
        %v1185 = vmul.f32 %v734, %v1089
        %v1186 = vmul.f32 %v736, %v1090
        %v1187 = vadd.f32 %v1171, %v1179
        %v1188 = vadd.f32 %v1172, %v1180
        %v1189 = vadd.f32 %v1173, %v1181
        %v1190 = vadd.f32 %v1174, %v1182
        %v1191 = vadd.f32 %v1175, %v1183
        %v1192 = vadd.f32 %v1176, %v1184
        %v1193 = vadd.f32 %v1177, %v1185
        %v1194 = vadd.f32 %v1178, %v1186
        %1195 = vset.pattern.permute.xlu0 1
        %1196 = vperm.xlu0 %1195, %v834
        %v1197 = vpop.permute.xlu0 %1196
        %1199 = vset.pattern.permute.xlu0 1
        %1200 = vperm.xlu0 %1199, %v835
        %v1201 = vpop.permute.xlu0 %1200
        %1203 = vset.pattern.permute.xlu0 1
        %1204 = vperm.xlu0 %1203, %v836
        %v1205 = vpop.permute.xlu0 %1204
        %1207 = vset.pattern.permute.xlu0 1
        %1208 = vperm.xlu0 %1207, %v837
        %v1209 = vpop.permute.xlu0 %1208
        %v1211 = vmul.f32 %v1197, %v1187
        %v1212 = vmul.f32 %v1197, %v1188
        %v1213 = vmul.f32 %v1201, %v1189
        %v1214 = vmul.f32 %v1201, %v1190
        %v1215 = vmul.f32 %v1205, %v1191
        %v1216 = vmul.f32 %v1205, %v1192
        %v1217 = vmul.f32 %v1209, %v1193
        %v1218 = vmul.f32 %v1209, %v1194
        %v1219 = vadd.f32 %v1211, %v1213
        %v1220 = vadd.f32 %v1219, %v1215
        %v1221 = vadd.f32 %v1220, %v1217
        %v1222 = vrot.slane %v1221, 4
        %v1223 = vadd.f32 %v1221, %v1222
        %v1224 = vrot.slane %v1223, 2
        %v1225 = vadd.f32 %v1223, %v1224
        %v1226 = vrot.slane %v1225, 1
        %v1227 = vadd.f32 %v1225, %v1226
        %v1228 = vadd.f32 %v1212, %v1214
        %v1229 = vadd.f32 %v1228, %v1216
        %v1230 = vadd.f32 %v1229, %v1218
        %v1231 = vrot.slane %v1230, 4
        %v1232 = vadd.f32 %v1230, %v1231
        %v1233 = vrot.slane %v1232, 2
        %v1234 = vadd.f32 %v1232, %v1233
        %v1235 = vrot.slane %v1234, 1
        %v1236 = vadd.f32 %v1234, %v1235
        %v1237 = vadd.f32 %v1227, 0.0
        %v1238 = vadd.f32 %v1236, 0.0
        %v1239 = vmul.f32 %v740, %v1187
        %v1240 = vmul.f32 %v742, %v1188
        %v1241 = vmul.f32 %v760, %v1187
        %v1242 = vmul.f32 %v762, %v1188
        %v1243 = vmul.f32 %v780, %v1187
        %v1244 = vmul.f32 %v782, %v1188
        %v1245 = vmul.f32 %v800, %v1187
        %v1246 = vmul.f32 %v802, %v1188
        %v1247 = vmul.f32 %v744, %v1189
        %v1248 = vmul.f32 %v746, %v1190
        %v1249 = vmul.f32 %v764, %v1189
        %v1250 = vmul.f32 %v766, %v1190
        %v1251 = vmul.f32 %v784, %v1189
        %v1252 = vmul.f32 %v786, %v1190
        %v1253 = vmul.f32 %v804, %v1189
        %v1254 = vmul.f32 %v806, %v1190
        %v1255 = vadd.f32 %v1239, %v1247
        %v1256 = vadd.f32 %v1240, %v1248
        %v1257 = vadd.f32 %v1241, %v1249
        %v1258 = vadd.f32 %v1242, %v1250
        %v1259 = vadd.f32 %v1243, %v1251
        %v1260 = vadd.f32 %v1244, %v1252
        %v1261 = vadd.f32 %v1245, %v1253
        %v1262 = vadd.f32 %v1246, %v1254
        %v1263 = vmul.f32 %v750, %v1191
        %v1264 = vmul.f32 %v752, %v1192
        %v1265 = vmul.f32 %v770, %v1191
        %v1266 = vmul.f32 %v772, %v1192
        %v1267 = vmul.f32 %v790, %v1191
        %v1268 = vmul.f32 %v792, %v1192
        %v1269 = vmul.f32 %v810, %v1191
        %v1270 = vmul.f32 %v812, %v1192
        %v1271 = vadd.f32 %v1255, %v1263
        %v1272 = vadd.f32 %v1256, %v1264
        %v1273 = vadd.f32 %v1257, %v1265
        %v1274 = vadd.f32 %v1258, %v1266
        %v1275 = vadd.f32 %v1259, %v1267
        %v1276 = vadd.f32 %v1260, %v1268
        %v1277 = vadd.f32 %v1261, %v1269
        %v1278 = vadd.f32 %v1262, %v1270
        %v1279 = vmul.f32 %v754, %v1193
        %v1280 = vmul.f32 %v756, %v1194
        %v1281 = vmul.f32 %v774, %v1193
        %v1282 = vmul.f32 %v776, %v1194
        %v1283 = vmul.f32 %v794, %v1193
        %v1284 = vmul.f32 %v796, %v1194
        %v1285 = vmul.f32 %v814, %v1193
        %v1286 = vmul.f32 %v816, %v1194
        %v1287 = vadd.f32 %v1271, %v1279
        %v1288 = vadd.f32 %v1272, %v1280
        %v1289 = vadd.f32 %v1273, %v1281
        %v1290 = vadd.f32 %v1274, %v1282
        %v1291 = vadd.f32 %v1275, %v1283
        %v1292 = vadd.f32 %v1276, %v1284
        %v1293 = vadd.f32 %v1277, %v1285
        %v1294 = vadd.f32 %v1278, %v1286
        %1295 = vset.pattern.permute.xlu0 1
        %1296 = vperm.xlu0 %1295, %v838
        %v1297 = vpop.permute.xlu0 %1296
        %1299 = vset.pattern.permute.xlu0 1
        %1300 = vperm.xlu0 %1299, %v839
        %v1301 = vpop.permute.xlu0 %1300
        %1303 = vset.pattern.permute.xlu0 1
        %1304 = vperm.xlu0 %1303, %v840
        %v1305 = vpop.permute.xlu0 %1304
        %1307 = vset.pattern.permute.xlu0 1
        %1308 = vperm.xlu0 %1307, %v841
        %v1309 = vpop.permute.xlu0 %1308
        %v1311 = vmul.f32 %v1297, %v1287
        %v1312 = vmul.f32 %v1297, %v1288
        %v1313 = vmul.f32 %v1301, %v1289
        %v1314 = vmul.f32 %v1301, %v1290
        %v1315 = vmul.f32 %v1305, %v1291
        %v1316 = vmul.f32 %v1305, %v1292
        %v1317 = vmul.f32 %v1309, %v1293
        %v1318 = vmul.f32 %v1309, %v1294
        %v1319 = vadd.f32 %v1311, %v1313
        %v1320 = vadd.f32 %v1319, %v1315
        %v1321 = vadd.f32 %v1320, %v1317
        %v1322 = vrot.slane %v1321, 4
        %v1323 = vadd.f32 %v1321, %v1322
        %v1324 = vrot.slane %v1323, 2
        %v1325 = vadd.f32 %v1323, %v1324
        %v1326 = vrot.slane %v1325, 1
        %v1327 = vadd.f32 %v1325, %v1326
        %v1328 = vadd.f32 %v1312, %v1314
        %v1329 = vadd.f32 %v1328, %v1316
        %v1330 = vadd.f32 %v1329, %v1318
        %v1331 = vrot.slane %v1330, 4
        %v1332 = vadd.f32 %v1330, %v1331
        %v1333 = vrot.slane %v1332, 2
        %v1334 = vadd.f32 %v1332, %v1333
        %v1335 = vrot.slane %v1334, 1
        %v1336 = vadd.f32 %v1334, %v1335
        %v1337 = vadd.f32 %v1237, %v1327
        %v1338 = vadd.f32 %v1238, %v1336
        %v1339 = vadd.f32 %v820, %v1063
        %v1340 = vadd.f32 %v822, %v1076
        %v1341 = vadd.f32 %v1339, %v1337
        %v1342 = vadd.f32 %v1340, %v1338
        %v1345 = vcombine.low %v1341, %v1342
        %v1347 = vunpack.c.l.s4 1966171168
        %v1348 = vunpack.c.0.s8 %v1347
        %v1349 = vlaneseq
        %v1350 = vshrl.u32 %v1349, 7
        %v1351 = vsub.s32 %v1348, %v1350
        %v1352 = vrot.slane %v1345, %v1351
        %v1354 = vunpack.c.l.s4 1966171168
        %v1355 = vunpack.c.0.s8 %v1354
        %v1356 = vlaneseq
        %v1357 = vshrl.u32 %v1356, 7
        %v1358 = vsub.s32 %v1355, %v1357
        %v1359 = vrot.slane %v1352, %v1358
        %v1361 = vlaneseq
        %vm1362 = vcmp.ge.s32.totalorder %v1361, 0
        %vm1363 = vcmp.lt.s32.totalorder %v1361, 256
        %vm1364 = vmand %vm1362, %vm1363
        %1365 = vst.msk [vmem:[%s206] sm:$0x3] %vm1364, %v1359
        %s1366 = smul.u32 2, %s13
        %p1367 = scmp.lt.s32.totalorder %s1366, 3
        %s1368 = scalar_select %p1367, %s1366, 3
        %s1369 = scalar_lea.vmem %s2, %s1368
        // Predicated region
        $region67: #{xdeepfm_pallas.1} parent=61 // pred_check
          %p1370 = pneg %p78
        $region68: #{xdeepfm_pallas.1} parent=61 // pred_check_branch
          %1372 = sbr.rel (%p1370) target = $region70
        $region69: #{xdeepfm_pallas.1} parent=61 // pred_region
          %s1373 = smul.u32 2, %s13
        $region70: #{xdeepfm_pallas.1} parent=61 // pred_fallthru
          _
      $region62: #{xdeepfm_pallas.1} parent=5 // pred_fallthru
        _
      %p1374 = scmp.le.s32.totalorder 2, %s8
      // Predicated region
      $region71: #{xdeepfm_pallas.1} parent=5 // pred_check
        %p1375 = pneg %p1374
      $region72: #{xdeepfm_pallas.1} parent=5 // pred_check_branch
        %1377 = sbr.rel (%p1375) target = $region74
      $region73: #{xdeepfm_pallas.1} parent=5 // pred_region
        %s1378 = ssub.s32 %s8, 2
        // Predicated region
        $region75: #{xdeepfm_pallas.1} parent=73 // pred_check
          %p1379 = pneg %p84
        $region76: #{xdeepfm_pallas.1} parent=73 // pred_check_branch
          %1381 = sbr.rel (%p1379) target = $region78
        $region77: #{xdeepfm_pallas.1} parent=73 // pred_region
          %s1382 = smul.u32 2, %s14
          %p1383 = scmp.lt.s32.totalorder %s1382, 3
          %s1384 = scalar_select %p1383, %s1382, 3
          %s1385 = scalar_lea.vmem %s2, %s1384
        $region78: #{xdeepfm_pallas.1} parent=73 // pred_fallthru
          _
      $region74: #{xdeepfm_pallas.1} parent=5 // pred_fallthru
        _
    $region6: #{xdeepfm_pallas.1} parent=1 // loop_footer
      %s12 = sadd.s32 1, %s8
    $region7: #{xdeepfm_pallas.1} parent=1 // loop_footer_branch
      %7 = sbr.rel target = $region3
    $region8: #{xdeepfm_pallas.1} parent=1 // loop_exit
      _

</llo_original>
